<compile_context>
chip_gen: v7x
topology: tpu7x:2x2x1
jax: 0.10.0
libtpu: 0.0.40
codegen_flags: <defaults>
</compile_context>

<pallas_src>
import functools

import jax
import jax.numpy as jnp
from jax.experimental import pallas as pl
from jax.experimental.pallas import tpu as pltpu


def _lm_kernel(x_ref, bias_ref, ln1_ref, ln2_ref, lnf_ref,
               wqkv_ref, wo_ref, w1_ref, w2_ref, wlm_ref,
               out_ref, yn_ref, *, hidden, eps=1e-6):
    """Fused decoder body (vocab-tile 0 only) + vocab-tiled LM head.

    x_ref:    (R, D)  bf16 embedded tokens (R = padded B*S rows)
    bias_ref: (R, R)  f32 block-diagonal-causal additive mask (0 / -1e30)
    wlm_ref:  (D, TV) bf16 LM-head tile for this grid step
    out_ref:  (R, TV) f32 logits tile
    yn_ref:   (R, D)  bf16 VMEM scratch holding the final normalized hidden state
    """

    @pl.when(pl.program_id(0) == 0)
    def _decoder_body():
        x = x_ref[...].astype(jnp.float32)                      # (R, D)

        def rmsnorm(h, w):
            var = jnp.mean(h * h, axis=-1, keepdims=True)
            return h * jax.lax.rsqrt(var + eps) * w             # w: (1, D) broadcasts

        # --- attention block (fused QKV projection) ---
        xn = rmsnorm(x, ln1_ref[...])
        qkv = jnp.dot(xn.astype(jnp.bfloat16), wqkv_ref[...],
                      preferred_element_type=jnp.float32)       # (R, 3D)
        q = qkv[:, :hidden]
        k = qkv[:, hidden:2 * hidden]
        v = qkv[:, 2 * hidden:]

        scale = jnp.float32(hidden ** -0.5)                     # static constant
        # q @ k.T via dot_general (no explicit transpose relayout), f32 accumulate.
        scores = jax.lax.dot_general(
            q.astype(jnp.bfloat16), k.astype(jnp.bfloat16),
            dimension_numbers=(((1,), (1,)), ((), ())),
            preferred_element_type=jnp.float32) * scale         # (R, R)
        scores = scores + bias_ref[...]                         # precomputed causal mask

        # numerically-stable softmax; approx reciprocal runs on the (idle) EUP slot.
        m = jnp.max(scores, axis=-1, keepdims=True)
        p = jnp.exp(scores - m)
        p = p * pl.reciprocal(jnp.sum(p, axis=-1, keepdims=True), approx=True)

        attn = jnp.dot(p.astype(jnp.bfloat16), v.astype(jnp.bfloat16),
                       preferred_element_type=jnp.float32)      # (R, D)
        attn_out = jnp.dot(attn.astype(jnp.bfloat16), wo_ref[...],
                           preferred_element_type=jnp.float32)
        h = x + attn_out

        # --- MLP block ---
        hn = rmsnorm(h, ln2_ref[...])
        mid = jnp.dot(hn.astype(jnp.bfloat16), w1_ref[...],
                      preferred_element_type=jnp.float32)       # (R, F)
        mid = jax.nn.gelu(mid)                                  # tanh-approx -> EUP
        mlp_out = jnp.dot(mid.astype(jnp.bfloat16), w2_ref[...],
                          preferred_element_type=jnp.float32)   # (R, D)
        y = h + mlp_out

        # --- final norm, staged in VMEM for the vocab-tiled LM head ---
        yn_ref[...] = rmsnorm(y, lnf_ref[...]).astype(jnp.bfloat16)

    # LM head: one lane-dense vocab tile per grid step (pipelines against wlm DMA).
    out_ref[...] = jnp.dot(yn_ref[...], wlm_ref[...],
                           preferred_element_type=jnp.float32)


def lm_forward(token_ids, params, *, tv=256):
    """token_ids: [B, S] int32  ->  logits [B, S, V] float32."""
    emb = params["embed"]                          # (V, D) bf16
    B, S = token_ids.shape
    V, D = emb.shape
    F = params["w1"].shape[1]
    assert V % tv == 0 and D % 128 == 0

    # Embedding gather kept as JAX glue (data-dependent gather), flattened to rows.
    x = jnp.take(emb, token_ids, axis=0).reshape(B * S, D)      # (B*S, D) bf16

    # Pad rows to a sublane multiple (8) so the MXU LHS tile is well-formed.
    R = ((B * S + 7) // 8) * 8
    if R != B * S:
        x = jnp.pad(x, ((0, R - B * S), (0, 0)))

    # Precomputed block-diagonal causal mask bias over flattened rows (row r = b*S + i):
    # attend iff same batch and key position <= query position.  Padded rows are harmless
    # (all-zero activations, softmax stays finite) and are dropped after the kernel.
    idx = jnp.arange(R)
    b_idx = idx // S
    s_idx = idx % S
    allow = (b_idx[:, None] == b_idx[None, :]) & (s_idx[None, :] <= s_idx[:, None])
    bias = jnp.where(allow, 0.0, -1e30).astype(jnp.float32)     # (R, R)

    nv = V // tv
    kernel = functools.partial(_lm_kernel, hidden=D)

    # Advisory cost estimate so XLA schedules the gather/reshape around the call sensibly.
    flops = 2 * R * (3 * D * D + 2 * R * D + D * D + 2 * D * F + D * V)
    transcendentals = R * R + R * F + 4 * R
    bytes_accessed = (R * D * 2 + R * R * 4 + 3 * D * 4
                      + (3 * D * D + D * D + D * F + F * D + D * V) * 2
                      + R * V * 4)

    out = pl.pallas_call(
        kernel,
        out_shape=jax.ShapeDtypeStruct((R, V), jnp.float32),
        grid_spec=pltpu.PrefetchScalarGridSpec(
            num_scalar_prefetch=0,
            grid=(nv,),
            in_specs=[
                pl.BlockSpec((R, D), lambda v: (0, 0)),         # x (bf16)
                pl.BlockSpec((R, R), lambda v: (0, 0)),         # causal mask bias
                pl.BlockSpec((1, D), lambda v: (0, 0)),         # ln1
                pl.BlockSpec((1, D), lambda v: (0, 0)),         # ln2
                pl.BlockSpec((1, D), lambda v: (0, 0)),         # lnf
                pl.BlockSpec((D, 3 * D), lambda v: (0, 0)),     # wqkv (fused)
                pl.BlockSpec((D, D), lambda v: (0, 0)),         # wo
                pl.BlockSpec((D, F), lambda v: (0, 0)),         # w1
                pl.BlockSpec((F, D), lambda v: (0, 0)),         # w2
                pl.BlockSpec((D, tv), lambda v: (0, v)),        # w_lm vocab tile
            ],
            out_specs=pl.BlockSpec((R, tv), lambda v: (0, v)),  # lane-dense logits tile
            scratch_shapes=[pltpu.VMEM((R, D), jnp.bfloat16)],  # yn (persists across grid)
        ),
        compiler_params=pltpu.CompilerParams(
            # Vocab axis carries the yn scratch dependency -> "arbitrary".
            dimension_semantics=("arbitrary",),
            # Explicit VMEM budget that also fits v7x's 64 MiB/TC.
            vmem_limit_bytes=48 * 1024 * 1024,
        ),
        cost_estimate=pl.CostEstimate(
            flops=flops,
            transcendentals=transcendentals,
            bytes_accessed=bytes_accessed),
    )(x, bias, params["ln1"], params["ln2"], params["lnf"],
      params["wqkv"], params["wo"], params["w1"], params["w2"], params["w_lm"])

    return out[:B * S].reshape(B, S, V)


def init_params(key, *, vocab, hidden, mlp_hidden):
    ks = jax.random.split(key, 6)
    s = 0.02

    def w(k, shape):
        return (jax.random.normal(k, shape, jnp.float32) * s).astype(jnp.bfloat16)

    return {
        "embed": w(ks[0], (vocab, hidden)),                 # bf16 embedding table
        "ln1":   jnp.ones((1, hidden), jnp.float32),
        "wqkv":  w(ks[1], (hidden, 3 * hidden)),            # fused q/k/v projection
        "wo":    w(ks[2], (hidden, hidden)),
        "ln2":   jnp.ones((1, hidden), jnp.float32),
        "w1":    w(ks[3], (hidden, mlp_hidden)),
        "w2":    w(ks[4], (mlp_hidden, hidden)),
        "lnf":   jnp.ones((1, hidden), jnp.float32),
        "w_lm":  w(ks[5], (hidden, vocab)),
    }


if __name__ == "__main__":
    # Small but lane-dense toy shapes: hidden = 128 (full vreg lane width),
    # vocab = 512 with 256-wide LM-head tiles so the vocab grid axis is exercised.
    B, S, D, V, F = 2, 8, 128, 512, 256

    key = jax.random.PRNGKey(0)
    k_tok, k_par = jax.random.split(key)

    # forward(x): x = x.long()  ->  integer token ids.
    token_ids = jax.random.randint(k_tok, (B, S), 0, V, dtype=jnp.int32)
    params = init_params(k_par, vocab=V, hidden=D, mlp_hidden=F)

    logits = jax.jit(lm_forward)(token_ids, params)
    jax.block_until_ready(logits)

    assert logits.shape == (B, S, V)
    assert bool(jnp.all(jnp.isfinite(logits)))
    print("KERNEL_OK")
</pallas_src>

<mosaic_0001>
module attributes {stable_mosaic.version = 11 : i64} {
  func.func @_lm_kernel(%arg0: i32, %arg1: memref<16x128xbf16, #tpu.memory_space<vmem>>, %arg2: memref<16x16xf32, #tpu.memory_space<vmem>>, %arg3: memref<1x128xf32, #tpu.memory_space<vmem>>, %arg4: memref<1x128xf32, #tpu.memory_space<vmem>>, %arg5: memref<1x128xf32, #tpu.memory_space<vmem>>, %arg6: memref<128x384xbf16, #tpu.memory_space<vmem>>, %arg7: memref<128x128xbf16, #tpu.memory_space<vmem>>, %arg8: memref<128x256xbf16, #tpu.memory_space<vmem>>, %arg9: memref<256x128xbf16, #tpu.memory_space<vmem>>, %arg10: memref<128x256xbf16, #tpu.memory_space<vmem>>, %arg11: memref<16x256xf32, #tpu.memory_space<vmem>>, %arg12: memref<16x128xbf16, #tpu.memory_space<vmem>>) attributes {dimension_semantics = [#tpu.dimension_semantics<arbitrary>], iteration_bounds = array<i64: 2>, scalar_prefetch = 0 : i64, scratch_operands = 1 : i64, tpu.core_type = #tpu.core_type<tc>, window_params = [{pipeline_mode = #tpu.pipeline_mode<synchronous>, transform_indices = @transform_0, window_bounds = array<i64: 16, 128>}, {pipeline_mode = #tpu.pipeline_mode<synchronous>, transform_indices = @transform_1, window_bounds = array<i64: 16, 16>}, {pipeline_mode = #tpu.pipeline_mode<synchronous>, transform_indices = @transform_2, window_bounds = array<i64: 1, 128>}, {pipeline_mode = #tpu.pipeline_mode<synchronous>, transform_indices = @transform_3, window_bounds = array<i64: 1, 128>}, {pipeline_mode = #tpu.pipeline_mode<synchronous>, transform_indices = @transform_4, window_bounds = array<i64: 1, 128>}, {pipeline_mode = #tpu.pipeline_mode<synchronous>, transform_indices = @transform_5, window_bounds = array<i64: 128, 384>}, {pipeline_mode = #tpu.pipeline_mode<synchronous>, transform_indices = @transform_6, window_bounds = array<i64: 128, 128>}, {pipeline_mode = #tpu.pipeline_mode<synchronous>, transform_indices = @transform_7, window_bounds = array<i64: 128, 256>}, {pipeline_mode = #tpu.pipeline_mode<synchronous>, transform_indices = @transform_8, window_bounds = array<i64: 256, 128>}, {transform_indices = @transform_9, window_bounds = array<i64: 128, 256>}, {transform_indices = @transform_10, window_bounds = array<i64: 16, 256>}]} {
    %c0_i32 = arith.constant 0 : i32
    %0 = arith.cmpi eq, %arg0, %c0_i32 : i32
    %1 = arith.extui %0 : i1 to i32
    %c0_i32_0 = arith.constant 0 : i32
    %2 = arith.cmpi ne, %1, %c0_i32_0 : i32
    scf.if %2 {
      %c0_6 = arith.constant 0 : index
      %c0_7 = arith.constant 0 : index
      %7 = vector.load %arg1[%c0_6, %c0_7] : memref<16x128xbf16, #tpu.memory_space<vmem>>, vector<16x128xbf16>
      %8 = arith.extf %7 : vector<16x128xbf16> to vector<16x128xf32>
      %c0_8 = arith.constant 0 : index
      %c0_9 = arith.constant 0 : index
      %9 = vector.load %arg3[%c0_8, %c0_9] : memref<1x128xf32, #tpu.memory_space<vmem>>, vector<1x128xf32>
      %10 = arith.mulf %8, %8 : vector<16x128xf32>
      %cst_10 = arith.constant dense<0.000000e+00> : vector<16xf32>
      %11 = vector.multi_reduction <add>, %10, %cst_10 [1] : vector<16x128xf32> to vector<16xf32>
      %12 = vector.shape_cast %11 : vector<16xf32> to vector<16x1xf32>
      %cst_11 = arith.constant 1.280000e+02 : f32
      %13 = vector.broadcast %cst_11 : f32 to vector<16x1xf32>
      %14 = arith.divf %12, %13 : vector<16x1xf32>
      %cst_12 = arith.constant 9.99999997E-7 : f32
      %15 = vector.broadcast %cst_12 : f32 to vector<16x1xf32>
      %16 = arith.addf %14, %15 : vector<16x1xf32>
      %17 = math.rsqrt %16 : vector<16x1xf32>
      %18 = vector.broadcast %17 : vector<16x1xf32> to vector<16x128xf32>
      %19 = arith.mulf %8, %18 : vector<16x128xf32>
      %20 = vector.broadcast %9 : vector<1x128xf32> to vector<16x128xf32>
      %21 = arith.mulf %19, %20 : vector<16x128xf32>
      %22 = arith.truncf %21 : vector<16x128xf32> to vector<16x128xbf16>
      %c0_13 = arith.constant 0 : index
      %c0_14 = arith.constant 0 : index
      %23 = vector.load %arg6[%c0_13, %c0_14] : memref<128x384xbf16, #tpu.memory_space<vmem>>, vector<128x384xbf16>
      %cst_15 = arith.constant dense<0.000000e+00> : vector<16x384xf32>
      %24 = tpu.matmul %22, %23, %cst_15 {dimension_numbers = #tpu.dot_dimension_numbers<[1], [0], [0], [1], [0, 0, 1, 1], [], []>} : vector<16x128xbf16>, vector<128x384xbf16>, vector<16x384xf32> -> vector<16x384xf32>
      %25 = vector.extract_strided_slice %24 {offsets = [0, 0], sizes = [16, 128], strides = [1, 1]} : vector<16x384xf32> to vector<16x128xf32>
      %26 = vector.extract_strided_slice %24 {offsets = [0, 128], sizes = [16, 128], strides = [1, 1]} : vector<16x384xf32> to vector<16x128xf32>
      %27 = vector.extract_strided_slice %24 {offsets = [0, 256], sizes = [16, 128], strides = [1, 1]} : vector<16x384xf32> to vector<16x128xf32>
      %28 = arith.truncf %25 : vector<16x128xf32> to vector<16x128xbf16>
      %29 = arith.truncf %26 : vector<16x128xf32> to vector<16x128xbf16>
      %cst_16 = arith.constant dense<0.000000e+00> : vector<16x16xf32>
      %30 = tpu.matmul %28, %29, %cst_16 {dimension_numbers = #tpu.dot_dimension_numbers<[1], [1], [0], [0], [0, 0, 1, 0], [], []>} : vector<16x128xbf16>, vector<16x128xbf16>, vector<16x16xf32> -> vector<16x16xf32>
      %cst_17 = arith.constant 0.0883883461 : f32
      %31 = vector.broadcast %cst_17 : f32 to vector<16x16xf32>
      %32 = arith.mulf %30, %31 : vector<16x16xf32>
      %c0_18 = arith.constant 0 : index
      %c0_19 = arith.constant 0 : index
      %33 = vector.load %arg2[%c0_18, %c0_19] : memref<16x16xf32, #tpu.memory_space<vmem>>, vector<16x16xf32>
      %34 = arith.addf %32, %33 : vector<16x16xf32>
      %cst_20 = arith.constant dense<0xFF800000> : vector<16xf32>
      %35 = vector.multi_reduction <maximumf>, %34, %cst_20 [1] : vector<16x16xf32> to vector<16xf32>
      %36 = vector.shape_cast %35 : vector<16xf32> to vector<16x1xf32>
      %37 = vector.broadcast %36 : vector<16x1xf32> to vector<16x16xf32>
      %38 = arith.subf %34, %37 : vector<16x16xf32>
      %39 = math.exp %38 : vector<16x16xf32>
      %cst_21 = arith.constant dense<0.000000e+00> : vector<16xf32>
      %40 = vector.multi_reduction <add>, %39, %cst_21 [1] : vector<16x16xf32> to vector<16xf32>
      %41 = vector.shape_cast %40 : vector<16xf32> to vector<16x1xf32>
      %42 = tpu.reciprocal %41 {approx = true} : vector<16x1xf32> -> vector<16x1xf32>
      %43 = vector.broadcast %42 : vector<16x1xf32> to vector<16x16xf32>
      %44 = arith.mulf %39, %43 : vector<16x16xf32>
      %45 = arith.truncf %44 : vector<16x16xf32> to vector<16x16xbf16>
      %46 = arith.truncf %27 : vector<16x128xf32> to vector<16x128xbf16>
      %cst_22 = arith.constant dense<0.000000e+00> : vector<16x128xf32>
      %47 = tpu.matmul %45, %46, %cst_22 {dimension_numbers = #tpu.dot_dimension_numbers<[1], [0], [0], [1], [0, 0, 1, 1], [], []>} : vector<16x16xbf16>, vector<16x128xbf16>, vector<16x128xf32> -> vector<16x128xf32>
      %48 = arith.truncf %47 : vector<16x128xf32> to vector<16x128xbf16>
      %c0_23 = arith.constant 0 : index
      %c0_24 = arith.constant 0 : index
      %49 = vector.load %arg7[%c0_23, %c0_24] : memref<128x128xbf16, #tpu.memory_space<vmem>>, vector<128x128xbf16>
      %cst_25 = arith.constant dense<0.000000e+00> : vector<16x128xf32>
      %50 = tpu.matmul %48, %49, %cst_25 {dimension_numbers = #tpu.dot_dimension_numbers<[1], [0], [0], [1], [0, 0, 1, 1], [], []>} : vector<16x128xbf16>, vector<128x128xbf16>, vector<16x128xf32> -> vector<16x128xf32>
      %51 = arith.addf %8, %50 : vector<16x128xf32>
      %c0_26 = arith.constant 0 : index
      %c0_27 = arith.constant 0 : index
      %52 = vector.load %arg4[%c0_26, %c0_27] : memref<1x128xf32, #tpu.memory_space<vmem>>, vector<1x128xf32>
      %53 = arith.mulf %51, %51 : vector<16x128xf32>
      %cst_28 = arith.constant dense<0.000000e+00> : vector<16xf32>
      %54 = vector.multi_reduction <add>, %53, %cst_28 [1] : vector<16x128xf32> to vector<16xf32>
      %55 = vector.shape_cast %54 : vector<16xf32> to vector<16x1xf32>
      %cst_29 = arith.constant 1.280000e+02 : f32
      %56 = vector.broadcast %cst_29 : f32 to vector<16x1xf32>
      %57 = arith.divf %55, %56 : vector<16x1xf32>
      %cst_30 = arith.constant 9.99999997E-7 : f32
      %58 = vector.broadcast %cst_30 : f32 to vector<16x1xf32>
      %59 = arith.addf %57, %58 : vector<16x1xf32>
      %60 = math.rsqrt %59 : vector<16x1xf32>
      %61 = vector.broadcast %60 : vector<16x1xf32> to vector<16x128xf32>
      %62 = arith.mulf %51, %61 : vector<16x128xf32>
      %63 = vector.broadcast %52 : vector<1x128xf32> to vector<16x128xf32>
      %64 = arith.mulf %62, %63 : vector<16x128xf32>
      %65 = arith.truncf %64 : vector<16x128xf32> to vector<16x128xbf16>
      %c0_31 = arith.constant 0 : index
      %c0_32 = arith.constant 0 : index
      %66 = vector.load %arg8[%c0_31, %c0_32] : memref<128x256xbf16, #tpu.memory_space<vmem>>, vector<128x256xbf16>
      %cst_33 = arith.constant dense<0.000000e+00> : vector<16x256xf32>
      %67 = tpu.matmul %65, %66, %cst_33 {dimension_numbers = #tpu.dot_dimension_numbers<[1], [0], [0], [1], [0, 0, 1, 1], [], []>} : vector<16x128xbf16>, vector<128x256xbf16>, vector<16x256xf32> -> vector<16x256xf32>
      %68 = arith.mulf %67, %67 : vector<16x256xf32>
      %69 = arith.mulf %67, %68 : vector<16x256xf32>
      %cst_34 = arith.constant 4.471500e-02 : f32
      %70 = vector.broadcast %cst_34 : f32 to vector<16x256xf32>
      %71 = arith.mulf %70, %69 : vector<16x256xf32>
      %72 = arith.addf %67, %71 : vector<16x256xf32>
      %cst_35 = arith.constant 0.797884583 : f32
      %73 = vector.broadcast %cst_35 : f32 to vector<16x256xf32>
      %74 = arith.mulf %73, %72 : vector<16x256xf32>
      %75 = math.tanh %74 : vector<16x256xf32>
      %cst_36 = arith.constant 1.000000e+00 : f32
      %76 = vector.broadcast %cst_36 : f32 to vector<16x256xf32>
      %77 = arith.addf %76, %75 : vector<16x256xf32>
      %cst_37 = arith.constant 5.000000e-01 : f32
      %78 = vector.broadcast %cst_37 : f32 to vector<16x256xf32>
      %79 = arith.mulf %78, %77 : vector<16x256xf32>
      %80 = arith.mulf %67, %79 : vector<16x256xf32>
      %81 = arith.truncf %80 : vector<16x256xf32> to vector<16x256xbf16>
      %c0_38 = arith.constant 0 : index
      %c0_39 = arith.constant 0 : index
      %82 = vector.load %arg9[%c0_38, %c0_39] : memref<256x128xbf16, #tpu.memory_space<vmem>>, vector<256x128xbf16>
      %cst_40 = arith.constant dense<0.000000e+00> : vector<16x128xf32>
      %83 = tpu.matmul %81, %82, %cst_40 {dimension_numbers = #tpu.dot_dimension_numbers<[1], [0], [0], [1], [0, 0, 1, 1], [], []>} : vector<16x256xbf16>, vector<256x128xbf16>, vector<16x128xf32> -> vector<16x128xf32>
      %84 = arith.addf %51, %83 : vector<16x128xf32>
      %c0_41 = arith.constant 0 : index
      %c0_42 = arith.constant 0 : index
      %85 = vector.load %arg5[%c0_41, %c0_42] : memref<1x128xf32, #tpu.memory_space<vmem>>, vector<1x128xf32>
      %86 = arith.mulf %84, %84 : vector<16x128xf32>
      %cst_43 = arith.constant dense<0.000000e+00> : vector<16xf32>
      %87 = vector.multi_reduction <add>, %86, %cst_43 [1] : vector<16x128xf32> to vector<16xf32>
      %88 = vector.shape_cast %87 : vector<16xf32> to vector<16x1xf32>
      %cst_44 = arith.constant 1.280000e+02 : f32
      %89 = vector.broadcast %cst_44 : f32 to vector<16x1xf32>
      %90 = arith.divf %88, %89 : vector<16x1xf32>
      %cst_45 = arith.constant 9.99999997E-7 : f32
      %91 = vector.broadcast %cst_45 : f32 to vector<16x1xf32>
      %92 = arith.addf %90, %91 : vector<16x1xf32>
      %93 = math.rsqrt %92 : vector<16x1xf32>
      %94 = vector.broadcast %93 : vector<16x1xf32> to vector<16x128xf32>
      %95 = arith.mulf %84, %94 : vector<16x128xf32>
      %96 = vector.broadcast %85 : vector<1x128xf32> to vector<16x128xf32>
      %97 = arith.mulf %95, %96 : vector<16x128xf32>
      %98 = arith.truncf %97 : vector<16x128xf32> to vector<16x128xbf16>
      %c0_46 = arith.constant 0 : index
      %c0_47 = arith.constant 0 : index
      %99 = vector.load %arg12[%c0_46, %c0_47] : memref<16x128xbf16, #tpu.memory_space<vmem>>, vector<16x128xbf16>
      tpu.vector_store %arg12[%c0_46, %c0_47], %98 {strides = array<i32>} : memref<16x128xbf16, #tpu.memory_space<vmem>>, vector<16x128xbf16>,
    } else {
    }
    %c0 = arith.constant 0 : index
    %c0_1 = arith.constant 0 : index
    %3 = vector.load %arg12[%c0, %c0_1] : memref<16x128xbf16, #tpu.memory_space<vmem>>, vector<16x128xbf16>
    %c0_2 = arith.constant 0 : index
    %c0_3 = arith.constant 0 : index
    %4 = vector.load %arg10[%c0_2, %c0_3] : memref<128x256xbf16, #tpu.memory_space<vmem>>, vector<128x256xbf16>
    %cst = arith.constant dense<0.000000e+00> : vector<16x256xf32>
    %5 = tpu.matmul %3, %4, %cst {dimension_numbers = #tpu.dot_dimension_numbers<[1], [0], [0], [1], [0, 0, 1, 1], [], []>} : vector<16x128xbf16>, vector<128x256xbf16>, vector<16x256xf32> -> vector<16x256xf32>
    %c0_4 = arith.constant 0 : index
    %c0_5 = arith.constant 0 : index
    %6 = vector.load %arg11[%c0_4, %c0_5] : memref<16x256xf32, #tpu.memory_space<vmem>>, vector<16x256xf32>
    tpu.vector_store %arg11[%c0_4, %c0_5], %5 {strides = array<i32>} : memref<16x256xf32, #tpu.memory_space<vmem>>, vector<16x256xf32>,
    return
  }
  func.func @transform_0(%arg0: i32) -> (i32, i32) {
    %c0_i32 = arith.constant 0 : i32
    %c0_i32_0 = arith.constant 0 : i32
    %c0_i32_1 = arith.constant 0 : i32
    return %c0_i32, %c0_i32_0 : i32, i32
  }
  func.func @transform_1(%arg0: i32) -> (i32, i32) {
    %c0_i32 = arith.constant 0 : i32
    %c0_i32_0 = arith.constant 0 : i32
    %c0_i32_1 = arith.constant 0 : i32
    return %c0_i32, %c0_i32_0 : i32, i32
  }
  func.func @transform_2(%arg0: i32) -> (i32, i32) {
    %c0_i32 = arith.constant 0 : i32
    %c0_i32_0 = arith.constant 0 : i32
    %c0_i32_1 = arith.constant 0 : i32
    return %c0_i32, %c0_i32_0 : i32, i32
  }
  func.func @transform_3(%arg0: i32) -> (i32, i32) {
    %c0_i32 = arith.constant 0 : i32
    %c0_i32_0 = arith.constant 0 : i32
    %c0_i32_1 = arith.constant 0 : i32
    return %c0_i32, %c0_i32_0 : i32, i32
  }
  func.func @transform_4(%arg0: i32) -> (i32, i32) {
    %c0_i32 = arith.constant 0 : i32
    %c0_i32_0 = arith.constant 0 : i32
    %c0_i32_1 = arith.constant 0 : i32
    return %c0_i32, %c0_i32_0 : i32, i32
  }
  func.func @transform_5(%arg0: i32) -> (i32, i32) {
    %c0_i32 = arith.constant 0 : i32
    %c0_i32_0 = arith.constant 0 : i32
    %c0_i32_1 = arith.constant 0 : i32
    return %c0_i32, %c0_i32_0 : i32, i32
  }
  func.func @transform_6(%arg0: i32) -> (i32, i32) {
    %c0_i32 = arith.constant 0 : i32
    %c0_i32_0 = arith.constant 0 : i32
    %c0_i32_1 = arith.constant 0 : i32
    return %c0_i32, %c0_i32_0 : i32, i32
  }
  func.func @transform_7(%arg0: i32) -> (i32, i32) {
    %c0_i32 = arith.constant 0 : i32
    %c0_i32_0 = arith.constant 0 : i32
    %c0_i32_1 = arith.constant 0 : i32
    return %c0_i32, %c0_i32_0 : i32, i32
  }
  func.func @transform_8(%arg0: i32) -> (i32, i32) {
    %c0_i32 = arith.constant 0 : i32
    %c0_i32_0 = arith.constant 0 : i32
    %c0_i32_1 = arith.constant 0 : i32
    return %c0_i32, %c0_i32_0 : i32, i32
  }
  func.func @transform_9(%arg0: i32) -> (i32, i32) {
    %c0_i32 = arith.constant 0 : i32
    %c0_i32_0 = arith.constant 0 : i32
    return %c0_i32, %arg0 : i32, i32
  }
  func.func @transform_10(%arg0: i32) -> (i32, i32) {
    %c0_i32 = arith.constant 0 : i32
    %c0_i32_0 = arith.constant 0 : i32
    return %c0_i32, %arg0 : i32, i32
  }
}

</mosaic_0001>

<llo_original>
// kernel: lm_forward.1
$region0: #{lm_forward.1}
  #allocation0 [shape = 'u32[]', space=smem, size = 0x4, offset = 0x4, fixed_abs, tag = 'smem constant byte address 0x4 - core index']
  #allocation1 [shape = 'u32[144,128]{1,0:T(1,128)}', space=vmem, size = 0x12000, scoped, tag = 'internal scratch']
  #allocation2 [shape = 'bf16[16,128]{1,0:T(16,128)(2,1)}', space=vmem, size = 0x1000, scoped, tag = 'scratch operand']
  %s0 = inlined_call_operand.vmem [shape: bf16[16,128], index: 0, kind: input, shape index: {}]
  %s1 = inlined_call_operand.vmem [shape: f32[16,16], index: 1, kind: input, shape index: {}]
  %s2 = inlined_call_operand.vmem [shape: f32[1,128], index: 2, kind: input, shape index: {}]
  %s3 = inlined_call_operand.vmem [shape: f32[1,128], index: 3, kind: input, shape index: {}]
  %s4 = inlined_call_operand.vmem [shape: f32[1,128], index: 4, kind: input, shape index: {}]
  %s5 = inlined_call_operand.hbm [shape: bf16[128,384], index: 5, kind: input, shape index: {}]
  %s6 = inlined_call_operand.hbm [shape: bf16[128,128], index: 6, kind: input, shape index: {}]
  %s7 = inlined_call_operand.vmem [shape: bf16[128,256], index: 7, kind: input, shape index: {}]
  %s8 = inlined_call_operand.hbm [shape: bf16[256,128], index: 8, kind: input, shape index: {}]
  %s9 = inlined_call_operand.hbm [shape: bf16[128,512], index: 9, kind: input, shape index: {}]
  %s10 = inlined_call_operand.hbm [shape: f32[16,512], index: 10, kind: output, shape index: {}]
  %s11 = sld [smem:[#allocation0]]
  $region93: #{lm_forward.1} parent=0
    _
  %s13 = ssub.s32 1, %s11
  %s14 = scalar_select 0, %s13, %s11
  $region1: #{lm_forward.1} parent=0
    #allocation3 [shape = 'u8[98304]{0}', space=vmem, size = 0x18000, scoped, tag = 'input window, operand 5, single buffered']
    #allocation4 [shape = 's32[2]{0}', space=sflag, size = 0x8, scoped, tag = 'scoped memory for lm_forward.1']
    #allocation5 [shape = 's32[2]{0}', space=sflag, size = 0x8, scoped, tag = 'scoped memory for lm_forward.1']
    #allocation6 [shape = 'u8[32768]{0}', space=vmem, size = 0x8000, scoped, tag = 'input window, operand 6, single buffered']
    #allocation7 [shape = 's32[1]{0}', space=sflag, size = 0x4, scoped, tag = 'scoped memory for lm_forward.1']
    #allocation8 [shape = 'u8[65536]{0}', space=vmem, size = 0x10000, scoped, tag = 'input window, operand 8, single buffered']
    #allocation9 [shape = 'u8[131072]{0}', space=vmem, size = 0x20000, scoped, tag = 'input window, operand 9']
    #allocation10 [shape = 's32[2]{0}', space=sflag, size = 0x8, scoped, tag = 'scoped memory for lm_forward.1']
    #allocation11 [shape = 'u8[32768]{0}', space=vmem, size = 0x8000, scoped, tag = 'output window, operand 0']
    %15 = vsyncpa [#allocation4], 0
    %16 = vsyncpa [#allocation7], 0
    %17 = vsyncpa [#allocation10], 0
    %s18 = scalar_lea.sflag [#allocation10], 1
    %19 = vsyncpa %s18, 0
    %20 = vsyncpa [#allocation5], 0
    %s21 = scalar_lea.sflag [#allocation5], 1
    %22 = vsyncpa %s21, 0
    loop: start=0, step=1, limit=4
    $region2: #{lm_forward.1} parent=1 // loop_pre_header
      _
    $region3: #{lm_forward.1} parent=1 // loop_header
      %s24 = sphi 0, %s28
      %p25 = scmp.ge.s32.totalorder %s24, 4
      %s32 = sphi 0, %s32
      %s34 = sphi 0, %s32
      %s35 = sphi 0, %s34
      %s49 = sphi 0, %s35
      %s53 = sphi 0, %s53
      %s55 = sphi 0, %s53
      %s56 = sphi 0, %s55
      %s70 = sphi 0, %s56
      %s74 = sphi 0, %s74
      %s76 = sphi 0, %s74
      %s77 = sphi 0, %s76
      %s91 = sphi 0, %s77
      %s95 = sphi 0, %s95
      %s97 = sphi 0, %s95
      %s98 = sphi 0, %s97
      %s112 = sphi 0, %s98
      %s116 = sphi 0, %s116
      %s118 = sphi 0, %s116
      %s119 = sphi 0, %s118
      %s133 = sphi 0, %s119
      %s137 = sphi 0, %s137
      %s139 = sphi 0, %s137
      %s140 = sphi 0, %s139
      %s154 = sphi 0, %s140
      %s158 = sphi 0, %s158
      %s160 = sphi 0, %s158
      %s161 = sphi 0, %s160
      %s175 = sphi 0, %s161
      %s179 = sphi 0, %s179
      %s181 = sphi 0, %s179
      %s182 = sphi 0, %s181
      %s196 = sphi 0, %s182
      %s200 = sphi 0, %s200
      %s202 = sphi 0, %s200
      %s203 = sphi 0, %s202
      %s217 = sphi 0, %s203
      %s223 = sphi 0, %s225
      %s226 = sphi 0, %s223
      %s227 = sphi 0, %s226
      %s243 = sphi 0, %s227
      %s249 = sphi 0, %s251
      %s252 = sphi 0, %s249
      %s253 = sphi 0, %s252
      %s269 = sphi 0, %s253
    $region4: #{lm_forward.1} parent=1 // loop_header_branch
      %27 = sbr.rel (%p25) target = $region8
    $region5: #{lm_forward.1} parent=1 // loop_body
      %s29 = ssub.s32 %s24, 1
      %s30 = ssub.s32 %s24, 2
      %s31 = sadd.s32 %s24, 1
      %s33 = sadd.s32 %s32, 1
      %p36 = scmp.eq.s32.totalorder %s24, 1
      %p37 = scmp.ne.s32.totalorder %s32, %s34
      %p38 = scmp.eq.s32.totalorder %s24, 0
      %p39 = por %p37, %p38
      %p40 = scmp.ne.s32.totalorder %s32, %s34
      %p41 = scmp.eq.s32.totalorder %s29, 1
      %p42 = por %p40, %p41
      %p43 = scmp.ne.s32.totalorder %s34, %s35
      %p44 = scmp.eq.s32.totalorder %s29, 0
      %p45 = por %p43, %p44
      %p46 = scmp.ne.s32.totalorder %s34, %s35
      %p47 = scmp.eq.s32.totalorder %s30, 1
      %p48 = por %p46, %p47
      %p50 = scmp.ne.s32.totalorder %s35, %s49
      %p51 = scmp.eq.s32.totalorder %s30, 0
      %p52 = por %p50, %p51
      %s54 = sadd.s32 %s53, 1
      %p57 = scmp.eq.s32.totalorder %s24, 1
      %p58 = scmp.ne.s32.totalorder %s53, %s55
      %p59 = scmp.eq.s32.totalorder %s24, 0
      %p60 = por %p58, %p59
      %p61 = scmp.ne.s32.totalorder %s53, %s55
      %p62 = scmp.eq.s32.totalorder %s29, 1
      %p63 = por %p61, %p62
      %p64 = scmp.ne.s32.totalorder %s55, %s56
      %p65 = scmp.eq.s32.totalorder %s29, 0
      %p66 = por %p64, %p65
      %p67 = scmp.ne.s32.totalorder %s55, %s56
      %p68 = scmp.eq.s32.totalorder %s30, 1
      %p69 = por %p67, %p68
      %p71 = scmp.ne.s32.totalorder %s56, %s70
      %p72 = scmp.eq.s32.totalorder %s30, 0
      %p73 = por %p71, %p72
      %s75 = sadd.s32 %s74, 1
      %p78 = scmp.eq.s32.totalorder %s24, 1
      %p79 = scmp.ne.s32.totalorder %s74, %s76
      %p80 = scmp.eq.s32.totalorder %s24, 0
      %p81 = por %p79, %p80
      %p82 = scmp.ne.s32.totalorder %s74, %s76
      %p83 = scmp.eq.s32.totalorder %s29, 1
      %p84 = por %p82, %p83
      %p85 = scmp.ne.s32.totalorder %s76, %s77
      %p86 = scmp.eq.s32.totalorder %s29, 0
      %p87 = por %p85, %p86
      %p88 = scmp.ne.s32.totalorder %s76, %s77
      %p89 = scmp.eq.s32.totalorder %s30, 1
      %p90 = por %p88, %p89
      %p92 = scmp.ne.s32.totalorder %s77, %s91
      %p93 = scmp.eq.s32.totalorder %s30, 0
      %p94 = por %p92, %p93
      %s96 = sadd.s32 %s95, 1
      %p99 = scmp.eq.s32.totalorder %s24, 1
      %p100 = scmp.ne.s32.totalorder %s95, %s97
      %p101 = scmp.eq.s32.totalorder %s24, 0
      %p102 = por %p100, %p101
      %p103 = scmp.ne.s32.totalorder %s95, %s97
      %p104 = scmp.eq.s32.totalorder %s29, 1
      %p105 = por %p103, %p104
      %p106 = scmp.ne.s32.totalorder %s97, %s98
      %p107 = scmp.eq.s32.totalorder %s29, 0
      %p108 = por %p106, %p107
      %p109 = scmp.ne.s32.totalorder %s97, %s98
      %p110 = scmp.eq.s32.totalorder %s30, 1
      %p111 = por %p109, %p110
      %p113 = scmp.ne.s32.totalorder %s98, %s112
      %p114 = scmp.eq.s32.totalorder %s30, 0
      %p115 = por %p113, %p114
      %s117 = sadd.s32 %s116, 1
      %p120 = scmp.eq.s32.totalorder %s24, 1
      %p121 = scmp.ne.s32.totalorder %s116, %s118
      %p122 = scmp.eq.s32.totalorder %s24, 0
      %p123 = por %p121, %p122
      %p124 = scmp.ne.s32.totalorder %s116, %s118
      %p125 = scmp.eq.s32.totalorder %s29, 1
      %p126 = por %p124, %p125
      %p127 = scmp.ne.s32.totalorder %s118, %s119
      %p128 = scmp.eq.s32.totalorder %s29, 0
      %p129 = por %p127, %p128
      %p130 = scmp.ne.s32.totalorder %s118, %s119
      %p131 = scmp.eq.s32.totalorder %s30, 1
      %p132 = por %p130, %p131
      %p134 = scmp.ne.s32.totalorder %s119, %s133
      %p135 = scmp.eq.s32.totalorder %s30, 0
      %p136 = por %p134, %p135
      %s138 = sadd.s32 %s137, 1
      %p141 = scmp.eq.s32.totalorder %s24, 1
      %p142 = scmp.ne.s32.totalorder %s137, %s139
      %p143 = scmp.eq.s32.totalorder %s24, 0
      %p144 = por %p142, %p143
      %p145 = scmp.ne.s32.totalorder %s137, %s139
      %p146 = scmp.eq.s32.totalorder %s29, 1
      %p147 = por %p145, %p146
      %p148 = scmp.ne.s32.totalorder %s139, %s140
      %p149 = scmp.eq.s32.totalorder %s29, 0
      %p150 = por %p148, %p149
      %p151 = scmp.ne.s32.totalorder %s139, %s140
      %p152 = scmp.eq.s32.totalorder %s30, 1
      %p153 = por %p151, %p152
      %p155 = scmp.ne.s32.totalorder %s140, %s154
      %p156 = scmp.eq.s32.totalorder %s30, 0
      %p157 = por %p155, %p156
      %s159 = sadd.s32 %s158, 1
      %p162 = scmp.eq.s32.totalorder %s24, 1
      %p163 = scmp.ne.s32.totalorder %s158, %s160
      %p164 = scmp.eq.s32.totalorder %s24, 0
      %p165 = por %p163, %p164
      %p166 = scmp.ne.s32.totalorder %s158, %s160
      %p167 = scmp.eq.s32.totalorder %s29, 1
      %p168 = por %p166, %p167
      %p169 = scmp.ne.s32.totalorder %s160, %s161
      %p170 = scmp.eq.s32.totalorder %s29, 0
      %p171 = por %p169, %p170
      %p172 = scmp.ne.s32.totalorder %s160, %s161
      %p173 = scmp.eq.s32.totalorder %s30, 1
      %p174 = por %p172, %p173
      %p176 = scmp.ne.s32.totalorder %s161, %s175
      %p177 = scmp.eq.s32.totalorder %s30, 0
      %p178 = por %p176, %p177
      %s180 = sadd.s32 %s179, 1
      %p183 = scmp.eq.s32.totalorder %s24, 1
      %p184 = scmp.ne.s32.totalorder %s179, %s181
      %p185 = scmp.eq.s32.totalorder %s24, 0
      %p186 = por %p184, %p185
      %p187 = scmp.ne.s32.totalorder %s179, %s181
      %p188 = scmp.eq.s32.totalorder %s29, 1
      %p189 = por %p187, %p188
      %p190 = scmp.ne.s32.totalorder %s181, %s182
      %p191 = scmp.eq.s32.totalorder %s29, 0
      %p192 = por %p190, %p191
      %p193 = scmp.ne.s32.totalorder %s181, %s182
      %p194 = scmp.eq.s32.totalorder %s30, 1
      %p195 = por %p193, %p194
      %p197 = scmp.ne.s32.totalorder %s182, %s196
      %p198 = scmp.eq.s32.totalorder %s30, 0
      %p199 = por %p197, %p198
      %s201 = sadd.s32 %s200, 1
      %p204 = scmp.eq.s32.totalorder %s24, 1
      %p205 = scmp.ne.s32.totalorder %s200, %s202
      %p206 = scmp.eq.s32.totalorder %s24, 0
      %p207 = por %p205, %p206
      %p208 = scmp.ne.s32.totalorder %s200, %s202
      %p209 = scmp.eq.s32.totalorder %s29, 1
      %p210 = por %p208, %p209
      %p211 = scmp.ne.s32.totalorder %s202, %s203
      %p212 = scmp.eq.s32.totalorder %s29, 0
      %p213 = por %p211, %p212
      %p214 = scmp.ne.s32.totalorder %s202, %s203
      %p215 = scmp.eq.s32.totalorder %s30, 1
      %p216 = por %p214, %p215
      %p218 = scmp.ne.s32.totalorder %s203, %s217
      %p219 = scmp.eq.s32.totalorder %s30, 0
      %p220 = por %p218, %p219
      %s221 = ssub.s32 %s24, %s31
      %p222 = scmp.eq.s32.totalorder %s221, 0
      %s224 = sadd.s32 %s223, 1
      %s225 = scalar_select %p222, %s223, %s224
      %p228 = pneg %p222
      %p229 = scmp.eq.s32.totalorder %s24, 1
      %p230 = por %p228, %p229
      %p231 = scmp.ne.s32.totalorder %s223, %s226
      %p232 = scmp.eq.s32.totalorder %s24, 0
      %p233 = por %p231, %p232
      %p234 = scmp.ne.s32.totalorder %s223, %s226
      %p235 = scmp.eq.s32.totalorder %s29, 1
      %p236 = por %p234, %p235
      %p237 = scmp.ne.s32.totalorder %s226, %s227
      %p238 = scmp.eq.s32.totalorder %s29, 0
      %p239 = por %p237, %p238
      %p240 = scmp.ne.s32.totalorder %s226, %s227
      %p241 = scmp.eq.s32.totalorder %s30, 1
      %p242 = por %p240, %p241
      %p244 = scmp.ne.s32.totalorder %s227, %s243
      %p245 = scmp.eq.s32.totalorder %s30, 0
      %p246 = por %p244, %p245
      %s247 = ssub.s32 %s24, %s31
      %p248 = scmp.eq.s32.totalorder %s247, 0
      %s250 = sadd.s32 %s249, 1
      %s251 = scalar_select %p248, %s249, %s250
      %p254 = pneg %p248
      %p255 = scmp.eq.s32.totalorder %s24, 1
      %p256 = por %p254, %p255
      %p257 = scmp.ne.s32.totalorder %s249, %s252
      %p258 = scmp.eq.s32.totalorder %s24, 0
      %p259 = por %p257, %p258
      %p260 = scmp.ne.s32.totalorder %s249, %s252
      %p261 = scmp.eq.s32.totalorder %s29, 1
      %p262 = por %p260, %p261
      %p263 = scmp.ne.s32.totalorder %s252, %s253
      %p264 = scmp.eq.s32.totalorder %s29, 0
      %p265 = por %p263, %p264
      %p266 = scmp.ne.s32.totalorder %s252, %s253
      %p267 = scmp.eq.s32.totalorder %s30, 1
      %p268 = por %p266, %p267
      %p270 = scmp.ne.s32.totalorder %s253, %s269
      %p271 = scmp.eq.s32.totalorder %s30, 0
      %p272 = por %p270, %p271
      %p273 = scmp.le.s32.totalorder 1, %s24
      %p274 = scmp.lt.s32.totalorder %s24, 3
      %p275 = pnand %p273, %p274
      %p276 = pneg %p275
      // Predicated region
      $region9: #{lm_forward.1} parent=5 // pred_check
        _
      $region10: #{lm_forward.1} parent=5 // pred_check_branch
        %278 = sbr.rel (%p275) target = $region12
      $region11: #{lm_forward.1} parent=5 // pred_region
        %s279 = ssub.s32 %s24, 1
        // Predicated region
        $region13: #{lm_forward.1} parent=11 // pred_check
          %p280 = pneg %p45
        $region14: #{lm_forward.1} parent=11 // pred_check_branch
          %282 = sbr.rel (%p280) target = $region16
        $region15: #{lm_forward.1} parent=11 // pred_region
          _
        $region16: #{lm_forward.1} parent=11 // pred_fallthru
          _
        // Predicated region
        $region17: #{lm_forward.1} parent=11 // pred_check
          %p283 = pneg %p66
        $region18: #{lm_forward.1} parent=11 // pred_check_branch
          %285 = sbr.rel (%p283) target = $region20
        $region19: #{lm_forward.1} parent=11 // pred_region
          _
        $region20: #{lm_forward.1} parent=11 // pred_fallthru
          _
        // Predicated region
        $region21: #{lm_forward.1} parent=11 // pred_check
          %p286 = pneg %p87
        $region22: #{lm_forward.1} parent=11 // pred_check_branch
          %288 = sbr.rel (%p286) target = $region24
        $region23: #{lm_forward.1} parent=11 // pred_region
          _
        $region24: #{lm_forward.1} parent=11 // pred_fallthru
          _
        // Predicated region
        $region25: #{lm_forward.1} parent=11 // pred_check
          %p289 = pneg %p108
        $region26: #{lm_forward.1} parent=11 // pred_check_branch
          %291 = sbr.rel (%p289) target = $region28
        $region27: #{lm_forward.1} parent=11 // pred_region
          _
        $region28: #{lm_forward.1} parent=11 // pred_fallthru
          _
        // Predicated region
        $region29: #{lm_forward.1} parent=11 // pred_check
          %p292 = pneg %p129
        $region30: #{lm_forward.1} parent=11 // pred_check_branch
          %294 = sbr.rel (%p292) target = $region32
        $region31: #{lm_forward.1} parent=11 // pred_region
          _
        $region32: #{lm_forward.1} parent=11 // pred_fallthru
          _
        // Predicated region
        $region33: #{lm_forward.1} parent=11 // pred_check
          %p295 = pneg %p150
        $region34: #{lm_forward.1} parent=11 // pred_check_branch
          %297 = sbr.rel (%p295) target = $region36
        $region35: #{lm_forward.1} parent=11 // pred_region
          %s299 = ssub.s32 3072, 3072
          %300 = vsyncadd [#allocation4], %s299
          %s301 = sshll.u32 [#allocation3], 4
          %s302 = int_to_ptr.vmem [resolvable:$true] %s301
          %307 = dma.hbm_to_vmem [thread:$0]  %s5, 3072, %s302, [#allocation4], 192, 192, 12
        $region36: #{lm_forward.1} parent=11 // pred_fallthru
          _
        // Predicated region
        $region37: #{lm_forward.1} parent=11 // pred_check
          %p308 = pneg %p171
        $region38: #{lm_forward.1} parent=11 // pred_check_branch
          %310 = sbr.rel (%p308) target = $region40
        $region39: #{lm_forward.1} parent=11 // pred_region
          %s312 = ssub.s32 1024, 1024
          %313 = vsyncadd [#allocation7], %s312
          %s314 = sshll.u32 [#allocation6], 4
          %s315 = int_to_ptr.vmem [resolvable:$true] %s314
          %320 = dma.hbm_to_vmem [thread:$0]  %s6, 1024, %s315, [#allocation7], 64, 64, 4
        $region40: #{lm_forward.1} parent=11 // pred_fallthru
          _
        // Predicated region
        $region41: #{lm_forward.1} parent=11 // pred_check
          %p321 = pneg %p192
        $region42: #{lm_forward.1} parent=11 // pred_check_branch
          %323 = sbr.rel (%p321) target = $region44
        $region43: #{lm_forward.1} parent=11 // pred_region
          _
        $region44: #{lm_forward.1} parent=11 // pred_fallthru
          _
        // Predicated region
        $region45: #{lm_forward.1} parent=11 // pred_check
          %p324 = pneg %p213
        $region46: #{lm_forward.1} parent=11 // pred_check_branch
          %326 = sbr.rel (%p324) target = $region48
        $region47: #{lm_forward.1} parent=11 // pred_region
          %s328 = ssub.s32 2048, 2048
          %329 = vsyncadd [#allocation7], %s328
          %s330 = sshll.u32 [#allocation8], 4
          %s331 = int_to_ptr.vmem [resolvable:$true] %s330
          %336 = dma.hbm_to_vmem [thread:$0]  %s8, 2048, %s331, [#allocation7], 64, 64, 4
        $region48: #{lm_forward.1} parent=11 // pred_fallthru
          _
      $region12: #{lm_forward.1} parent=5 // pred_fallthru
        _
      %p337 = scmp.lt.s32.totalorder %s24, 2
      // Predicated region
      $region49: #{lm_forward.1} parent=5 // pred_check
        %p338 = pneg %p337
      $region50: #{lm_forward.1} parent=5 // pred_check_branch
        %340 = sbr.rel (%p338) target = $region52
      $region51: #{lm_forward.1} parent=5 // pred_region
        // Predicated region
        $region53: #{lm_forward.1} parent=51 // pred_check
          %p341 = pneg %p233
        $region54: #{lm_forward.1} parent=51 // pred_check_branch
          %343 = sbr.rel (%p341) target = $region56
        $region55: #{lm_forward.1} parent=51 // pred_region
          %s344 = sand.u32 %s223, 1
          %s345 = scalar_lea.sflag [#allocation10], %s344
          %s346 = sand.u32 %s223, 1
          %s347 = smul.addr %s346, 128
          %s348 = scalar_lea.vmem [#allocation9], %s347
          %s349 = smul.u32 2, %s24
          %s351 = ssub.s32 2048, 2048
          %352 = vsyncadd %s345, %s351
          %s353 = smul.addr %s349, 64
          %s354 = scalar_lea.hbm %s9, %s353
          %s355 = sshll.u32 %s348, 4
          %s356 = int_to_ptr.vmem [resolvable:$true] %s355
          %361 = dma.hbm_to_vmem [thread:$0]  %s354, 2048, %s356, %s345, 256, 128, 8
        $region56: #{lm_forward.1} parent=51 // pred_fallthru
          _
      $region52: #{lm_forward.1} parent=5 // pred_fallthru
        _
      %p362 = scmp.le.s32.totalorder 1, %s24
      %p363 = scmp.lt.s32.totalorder %s24, 3
      %p364 = pnand %p362, %p363
      %p365 = pneg %p364
      // Predicated region
      $region57: #{lm_forward.1} parent=5 // pred_check
        _
      $region58: #{lm_forward.1} parent=5 // pred_check_branch
        %367 = sbr.rel (%p364) target = $region60
      $region59: #{lm_forward.1} parent=5 // pred_region
        %s368 = ssub.s32 %s24, 1
        // Predicated region
        $region61: #{lm_forward.1} parent=59 // pred_check
          %p369 = pneg %p150
        $region62: #{lm_forward.1} parent=59 // pred_check_branch
          %371 = sbr.rel (%p369) target = $region64
        $region63: #{lm_forward.1} parent=59 // pred_region
          %372 = dma.done [#allocation4], 3072
        $region64: #{lm_forward.1} parent=59 // pred_fallthru
          _
        // Predicated region
        $region65: #{lm_forward.1} parent=59 // pred_check
          %p373 = pneg %p171
        $region66: #{lm_forward.1} parent=59 // pred_check_branch
          %375 = sbr.rel (%p373) target = $region68
        $region67: #{lm_forward.1} parent=59 // pred_region
          %376 = dma.done [#allocation7], 1024
        $region68: #{lm_forward.1} parent=59 // pred_fallthru
          _
        // Predicated region
        $region69: #{lm_forward.1} parent=59 // pred_check
          %p377 = pneg %p213
        $region70: #{lm_forward.1} parent=59 // pred_check_branch
          %379 = sbr.rel (%p377) target = $region72
        $region71: #{lm_forward.1} parent=59 // pred_region
          %380 = dma.done [#allocation7], 2048
        $region72: #{lm_forward.1} parent=59 // pred_fallthru
          _
        %s381 = sand.u32 %s226, 1
        %s382 = scalar_lea.sflag [#allocation10], %s381
        %s383 = sand.u32 %s226, 1
        %s384 = smul.addr %s383, 128
        %s385 = scalar_lea.vmem [#allocation9], %s384
        // Predicated region
        $region73: #{lm_forward.1} parent=59 // pred_check
          %p386 = pneg %p239
        $region74: #{lm_forward.1} parent=59 // pred_check_branch
          %388 = sbr.rel (%p386) target = $region76
        $region75: #{lm_forward.1} parent=59 // pred_region
          %389 = dma.done %s382, 2048
        $region76: #{lm_forward.1} parent=59 // pred_fallthru
          _
        %p390 = pneg %p45
        %p391 = pneg %p42
        %p392 = pneg %p66
        %p393 = pneg %p63
        %p394 = pneg %p87
        %p395 = pneg %p84
        %p396 = pneg %p108
        %p397 = pneg %p105
        %p398 = pneg %p129
        %p399 = pneg %p126
        %p400 = pneg %p150
        %p401 = pneg %p147
        %p402 = pneg %p171
        %p403 = pneg %p168
        %p404 = pneg %p192
        %p405 = pneg %p189
        %p406 = pneg %p213
        %p407 = pneg %p210
        %s408 = sand.u32 %s226, 1
        %s409 = scalar_lea.sflag [#allocation10], %s408
        %s410 = sand.u32 %s226, 1
        %s411 = smul.addr %s410, 128
        %s412 = scalar_lea.vmem [#allocation9], %s411
        %p413 = pneg %p239
        %p414 = pneg %p236
        %p415 = pneg %p265
        %p416 = pneg %p262
        %s417 = sand.u32 %s252, 1
        %s418 = scalar_lea.sflag [#allocation5], %s417
        %s419 = sand.u32 %s252, 1
        %s420 = smul.addr %s419, 32
        %s421 = scalar_lea.vmem [#allocation11], %s420
        %s422 = smul.u32 2, %s29
        %s423 = smul.u32 2, %s29
        %p425 = scmp.eq.s32.totalorder %s29, 0
        // Predicated region
        $region77: #{lm_forward.1} parent=59 // pred_check
          %p426 = pneg %p425
        $region78: #{lm_forward.1} parent=59 // pred_check_branch
          %428 = sbr.rel (%p426) target = $region80
        $region79: #{lm_forward.1} parent=59 // pred_region
          %v429 = vld [vmem:[%s0] sm:$0xf]
          %v430 = vld [vmem:[%s0 + $0x4] sm:$0xf]
          %v431 = vunpack.c.l.bf16 %v429
          %v432 = vunpack.c.l.bf16 %v430
          %v433 = vld [vmem:[%s2] sm:$0x1]
          %v434 = vmul.f32 %v431, %v431
          %v435 = vmul.f32 %v432, %v432
          %436 = vadd.xlane.f32.xlu0 %v434
          %v437 = vpop.xlane.xlu0 %436
          %438 = vadd.xlane.f32.xlu0 %v435
          %v439 = vpop.xlane.xlu0 %438
          %v440 = vrcp.pop 128.0
          %v441 = vmul.f32 %v437, %v440
          %v442 = vmul.f32 %v439, %v440
          %v443 = vadd.f32 %v441, 1e-06
          %v444 = vadd.f32 %v442, 1e-06
          %v445 = vrsqrt.pop %v443
          %v446 = vrsqrt.pop %v444
          %v447 = vmul.f32 %v431, %v445
          %v448 = vmul.f32 %v432, %v446
          %v450 = vlaneseq
          %v451 = vshrl.u32 %v450, 7
          %v452 = vsub.s32 0, %v451
          %v453 = vrot.slane %v433, %v452
          %v455 = vmul.f32 %v447, %v453
          %v456 = vmul.f32 %v448, %v453
          %v457 = vpack.c.bf16 %v456, %v455
          %v458 = vld [vmem:[#allocation3] sm:$0xff]
          %v459 = vld [vmem:[#allocation3 + $0x8] sm:$0xf]
          %v460 = vld [vmem:[#allocation3 + $0xc] sm:$0xff]
          %v461 = vld [vmem:[#allocation3 + $0x14] sm:$0xf]
          %v462 = vld [vmem:[#allocation3 + $0x18] sm:$0xff]
          %v463 = vld [vmem:[#allocation3 + $0x20] sm:$0xf]
          %v464 = vld [vmem:[#allocation3 + $0x24] sm:$0xff]
          %v465 = vld [vmem:[#allocation3 + $0x2c] sm:$0xf]
          %v466 = vld [vmem:[#allocation3 + $0x30] sm:$0xff]
          %v467 = vld [vmem:[#allocation3 + $0x38] sm:$0xf]
          %v468 = vld [vmem:[#allocation3 + $0x3c] sm:$0xff]
          %v469 = vld [vmem:[#allocation3 + $0x44] sm:$0xf]
          %v470 = vld [vmem:[#allocation3 + $0x48] sm:$0xff]
          %v471 = vld [vmem:[#allocation3 + $0x50] sm:$0xf]
          %v472 = vld [vmem:[#allocation3 + $0x54] sm:$0xff]
          %v473 = vld [vmem:[#allocation3 + $0x5c] sm:$0xf]
          %v474 = vld [vmem:[#allocation3 + $0x60] sm:$0xff]
          %v475 = vld [vmem:[#allocation3 + $0x68] sm:$0xf]
          %v476 = vld [vmem:[#allocation3 + $0x6c] sm:$0xff]
          %v477 = vld [vmem:[#allocation3 + $0x74] sm:$0xf]
          %v478 = vld [vmem:[#allocation3 + $0x78] sm:$0xff]
          %v479 = vld [vmem:[#allocation3 + $0x80] sm:$0xf]
          %v480 = vld [vmem:[#allocation3 + $0x84] sm:$0xff]
          %v481 = vld [vmem:[#allocation3 + $0x8c] sm:$0xf]
          %v482 = vld [vmem:[#allocation3 + $0x90] sm:$0xff]
          %v483 = vld [vmem:[#allocation3 + $0x98] sm:$0xf]
          %v484 = vld [vmem:[#allocation3 + $0x9c] sm:$0xff]
          %v485 = vld [vmem:[#allocation3 + $0xa4] sm:$0xf]
          %v486 = vld [vmem:[#allocation3 + $0xa8] sm:$0xff]
          %v487 = vld [vmem:[#allocation3 + $0xb0] sm:$0xf]
          %v488 = vld [vmem:[#allocation3 + $0xb4] sm:$0xff]
          %v489 = vld [vmem:[#allocation3 + $0xbc] sm:$0xf]
          %v522 = vunpack.c.l.b16 %v458
          %v523 = vunpack.c.h.b16 %v458
          %v524 = vunpack.c.l.b16 %v459
          %v525 = vunpack.c.l.b16 %v460
          %v526 = vunpack.c.h.b16 %v460
          %v527 = vunpack.c.l.b16 %v461
          %v528 = vunpack.c.l.b16 %v462
          %v529 = vunpack.c.h.b16 %v462
          %v530 = vunpack.c.l.b16 %v463
          %v531 = vunpack.c.l.b16 %v464
          %v532 = vunpack.c.h.b16 %v464
          %v533 = vunpack.c.l.b16 %v465
          %v534 = vunpack.c.l.b16 %v466
          %v535 = vunpack.c.h.b16 %v466
          %v536 = vunpack.c.l.b16 %v467
          %v537 = vunpack.c.l.b16 %v468
          %v538 = vunpack.c.h.b16 %v468
          %v539 = vunpack.c.l.b16 %v469
          %v540 = vunpack.c.l.b16 %v470
          %v541 = vunpack.c.h.b16 %v470
          %v542 = vunpack.c.l.b16 %v471
          %v543 = vunpack.c.l.b16 %v472
          %v544 = vunpack.c.h.b16 %v472
          %v545 = vunpack.c.l.b16 %v473
          %v546 = vunpack.c.l.b16 %v474
          %v547 = vunpack.c.h.b16 %v474
          %v548 = vunpack.c.l.b16 %v475
          %v549 = vunpack.c.l.b16 %v476
          %v550 = vunpack.c.h.b16 %v476
          %v551 = vunpack.c.l.b16 %v477
          %v552 = vunpack.c.l.b16 %v478
          %v553 = vunpack.c.h.b16 %v478
          %v554 = vunpack.c.l.b16 %v479
          %v555 = vunpack.c.l.b16 %v480
          %v556 = vunpack.c.h.b16 %v480
          %v557 = vunpack.c.l.b16 %v481
          %v558 = vunpack.c.l.b16 %v482
          %v559 = vunpack.c.h.b16 %v482
          %v560 = vunpack.c.l.b16 %v483
          %v561 = vunpack.c.l.b16 %v484
          %v562 = vunpack.c.h.b16 %v484
          %v563 = vunpack.c.l.b16 %v485
          %v564 = vunpack.c.l.b16 %v486
          %v565 = vunpack.c.h.b16 %v486
          %v566 = vunpack.c.l.b16 %v487
          %v567 = vunpack.c.l.b16 %v488
          %v568 = vunpack.c.h.b16 %v488
          %v569 = vunpack.c.l.b16 %v489
          %v570 = vpack.c.b16 %v525, %v522
          %v571 = vpack.c.b16 %v526, %v523
          %v572 = vpack.c.b16 %v527, %v524
          %v573 = vpack.c.b16 %v531, %v528
          %v574 = vpack.c.b16 %v532, %v529
          %v575 = vpack.c.b16 %v533, %v530
          %v576 = vpack.c.b16 %v537, %v534
          %v577 = vpack.c.b16 %v538, %v535
          %v578 = vpack.c.b16 %v539, %v536
          %v579 = vpack.c.b16 %v543, %v540
          %v580 = vpack.c.b16 %v544, %v541
          %v581 = vpack.c.b16 %v545, %v542
          %v582 = vpack.c.b16 %v549, %v546
          %v583 = vpack.c.b16 %v550, %v547
          %v584 = vpack.c.b16 %v551, %v548
          %v585 = vpack.c.b16 %v555, %v552
          %v586 = vpack.c.b16 %v556, %v553
          %v587 = vpack.c.b16 %v557, %v554
          %v588 = vpack.c.b16 %v561, %v558
          %v589 = vpack.c.b16 %v562, %v559
          %v590 = vpack.c.b16 %v563, %v560
          %v591 = vpack.c.b16 %v567, %v564
          %v592 = vpack.c.b16 %v568, %v565
          %v593 = vpack.c.b16 %v569, %v566
          %618 = vmatprep.subr.bf16.mxu0 %v571
          %619 = vmatpush1.bf16.msra.mxu0 %v570
          %620 = vmatprep.subr.bf16.mxu0 %v574
          %621 = vmatpush1.bf16.msra.mxu0 %v573
          %622 = vmatprep.subr.bf16.mxu0 %v577
          %623 = vmatpush1.bf16.msra.mxu0 %v576
          %624 = vmatprep.subr.bf16.mxu0 %v580
          %625 = vmatpush1.bf16.msra.mxu0 %v579
          %626 = vmatprep.subr.bf16.mxu0 %v583
          %627 = vmatpush1.bf16.msra.mxu0 %v582
          %628 = vmatprep.subr.bf16.mxu0 %v586
          %629 = vmatpush1.bf16.msra.mxu0 %v585
          %630 = vmatprep.subr.bf16.mxu0 %v589
          %631 = vmatpush1.bf16.msra.mxu0 %v588
          %632 = vmatprep.subr.bf16.mxu0 %v592
          %633 = vmatpush1.bf16.msra.mxu0 %v591
          %634 = vmatprep.subr.bf16.mxu0 0
          %635 = vmatpush1.bf16.msra.mxu0 0
          %636 = vmatprep.subr.bf16.mxu0 0
          %637 = vmatpush1.bf16.msra.mxu0 0
          %638 = vmatprep.subr.bf16.mxu0 0
          %639 = vmatpush1.bf16.msra.mxu0 0
          %640 = vmatprep.subr.bf16.mxu0 0
          %641 = vmatpush1.bf16.msra.mxu0 0
          %642 = vmatprep.subr.bf16.mxu0 0
          %643 = vmatpush1.bf16.msra.mxu0 0
          %644 = vmatprep.subr.bf16.mxu0 0
          %645 = vmatpush1.bf16.msra.mxu0 0
          %646 = vmatprep.subr.bf16.mxu0 0
          %647 = vmatpush1.bf16.msra.mxu0 0
          %648 = vmatprep.subr.bf16.mxu0 0
          %649 = vmatpush1.bf16.msra.mxu0 0
          %650 = vmatprep.mubr.bf16.mxu0 0
          %651 = vmatmul.mubr.bf16.gmra.mrb[0].mxu0 %v457
          %v652 = vpop.f32.mrb[0].mxu0
          %v653 = vadd.f32 0.0, %v652
          %v654 = vpop.f32.mrb[0].mxu0
          %v655 = vadd.f32 0.0, %v654
          %v656 = vpop.f32.mrb[0].mxu0
          %v657 = vadd.f32 0.0, %v656
          %v658 = vpop.f32.mrb[0].mxu0
          %v659 = vadd.f32 0.0, %v658
          %660 = vdwg.mxu0
          %661 = vmatprep.subr.bf16.mxu0 0
          %662 = vmatpush1.bf16.msra.mxu0 %v572
          %663 = vmatprep.subr.bf16.mxu0 0
          %664 = vmatpush1.bf16.msra.mxu0 %v575
          %665 = vmatprep.subr.bf16.mxu0 0
          %666 = vmatpush1.bf16.msra.mxu0 %v578
          %667 = vmatprep.subr.bf16.mxu0 0
          %668 = vmatpush1.bf16.msra.mxu0 %v581
          %669 = vmatprep.subr.bf16.mxu0 0
          %670 = vmatpush1.bf16.msra.mxu0 %v584
          %671 = vmatprep.subr.bf16.mxu0 0
          %672 = vmatpush1.bf16.msra.mxu0 %v587
          %673 = vmatprep.subr.bf16.mxu0 0
          %674 = vmatpush1.bf16.msra.mxu0 %v590
          %675 = vmatprep.subr.bf16.mxu0 0
          %676 = vmatpush1.bf16.msra.mxu0 %v593
          %677 = vmatprep.subr.bf16.mxu0 0
          %678 = vmatpush1.bf16.msra.mxu0 0
          %679 = vmatprep.subr.bf16.mxu0 0
          %680 = vmatpush1.bf16.msra.mxu0 0
          %681 = vmatprep.subr.bf16.mxu0 0
          %682 = vmatpush1.bf16.msra.mxu0 0
          %683 = vmatprep.subr.bf16.mxu0 0
          %684 = vmatpush1.bf16.msra.mxu0 0
          %685 = vmatprep.subr.bf16.mxu0 0
          %686 = vmatpush1.bf16.msra.mxu0 0
          %687 = vmatprep.subr.bf16.mxu0 0
          %688 = vmatpush1.bf16.msra.mxu0 0
          %689 = vmatprep.subr.bf16.mxu0 0
          %690 = vmatpush1.bf16.msra.mxu0 0
          %691 = vmatprep.subr.bf16.mxu0 0
          %692 = vmatpush1.bf16.msra.mxu0 0
          %693 = vmatprep.mubr.bf16.mxu0 0
          %694 = vmatmul.mubr.bf16.gmra.mrb[0].mxu0 %v457
          %v695 = vpop.f32.mrb[0].mxu0
          %v696 = vadd.f32 0.0, %v695
          %v697 = vpop.f32.mrb[0].mxu0
          %v698 = vpop.f32.mrb[0].mxu0
          %v699 = vadd.f32 0.0, %v698
          %v700 = vpop.f32.mrb[0].mxu0
          %701 = vdwg.mxu0
          %v702 = vpack.c.bf16 %v657, %v653
          %v703 = vpack.c.bf16 %v659, %v655
          %704 = vmatprep.subr.bf16.mxu0 0
          %705 = vmatpush1.bf16.xpose.msra.mxu0 %v703
          %706 = vmatprep.subr.bf16.mxu0 0
          %707 = vmatpush1.bf16.xpose.msra.mxu0 0
          %708 = vmatprep.subr.bf16.mxu0 0
          %709 = vmatpush1.bf16.xpose.msra.mxu0 0
          %710 = vmatprep.subr.bf16.mxu0 0
          %711 = vmatpush1.bf16.xpose.msra.mxu0 0
          %712 = vmatprep.subr.bf16.mxu0 0
          %713 = vmatpush1.bf16.xpose.msra.mxu0 0
          %714 = vmatprep.subr.bf16.mxu0 0
          %715 = vmatpush1.bf16.xpose.msra.mxu0 0
          %716 = vmatprep.subr.bf16.mxu0 0
          %717 = vmatpush1.bf16.xpose.msra.mxu0 0
          %718 = vmatprep.subr.bf16.mxu0 0
          %719 = vmatpush1.bf16.xpose.msra.mxu0 0
          %720 = vmatprep.subr.bf16.mxu0 0
          %721 = vmatpush1.bf16.xpose.msra.mxu0 0
          %722 = vmatprep.subr.bf16.mxu0 0
          %723 = vmatpush1.bf16.xpose.msra.mxu0 0
          %724 = vmatprep.subr.bf16.mxu0 0
          %725 = vmatpush1.bf16.xpose.msra.mxu0 0
          %726 = vmatprep.subr.bf16.mxu0 0
          %727 = vmatpush1.bf16.xpose.msra.mxu0 0
          %728 = vmatprep.subr.bf16.mxu0 0
          %729 = vmatpush1.bf16.xpose.msra.mxu0 0
          %730 = vmatprep.subr.bf16.mxu0 0
          %731 = vmatpush1.bf16.xpose.msra.mxu0 0
          %732 = vmatprep.subr.bf16.mxu0 0
          %733 = vmatpush1.bf16.xpose.msra.mxu0 0
          %734 = vmatprep.subr.bf16.mxu0 0
          %735 = vmatpush1.bf16.xpose.msra.mxu0 0
          %736 = vmatprep.mubr.bf16.mxu0 0
          %737 = vmatmul.mubr.bf16.gmra.mrb[0].mxu0 %v702
          %v738 = vpop.f32.mrb[0].mxu0
          %v739 = vadd.f32 0.0, %v738
          %v740 = vpop.f32.mrb[0].mxu0
          %v741 = vpop.f32.mrb[0].mxu0
          %v742 = vadd.f32 0.0, %v741
          %v743 = vpop.f32.mrb[0].mxu0
          %744 = vdwg.mxu0
          %v745 = vmul.f32 %v739, 0.088388346
          %v746 = vmul.f32 %v742, 0.088388346
          %v747 = vld [vmem:[%s1] sm:$0xff]
          %v748 = vld [vmem:[%s1 + $0x8] sm:$0xff]
          %v749 = vadd.f32 %v745, %v747
          %v750 = vadd.f32 %v746, %v748
          %vm751 = vcmask 130048
          %v752 = vsel %vm751, %v749, -inf
          %753 = vmax.xlane.f32.xlu0 %v752
          %v754 = vpop.xlane.xlu0 %753
          %v755 = vsel %vm751, %v750, -inf
          %756 = vmax.xlane.f32.xlu0 %v755
          %v757 = vpop.xlane.xlu0 %756
          %v758 = vsub.f32 %v749, %v754
          %v759 = vsub.f32 %v750, %v757
          %v760 = vmul.f32 %v758, 1.442695
          %v761 = vpow.pop %v760
          %v762 = vmul.f32 %v759, 1.442695
          %v763 = vpow.pop %v762
          %v764 = vsel %vm751, %v761, 0.0
          %765 = vadd.xlane.f32.xlu0 %v764
          %v766 = vpop.xlane.xlu0 %765
          %v767 = vsel %vm751, %v763, 0.0
          %768 = vadd.xlane.f32.xlu0 %v767
          %v769 = vpop.xlane.xlu0 %768
          %v770 = vrcp.pop %v766
          %v771 = vrcp.pop %v769
          %v772 = vmul.f32 %v761, %v770
          %v773 = vmul.f32 %v763, %v771
          %v774 = vpack.c.bf16 %v773, %v772
          %v775 = vpack.c.bf16 %v699, %v696
          %v777 = vsel %vm751, %v774, 0
          %779 = vmatprep.subr.bf16.mxu0 0
          %780 = vmatpush1.bf16.msra.mxu0 %v775
          %781 = vmatprep.subr.bf16.mxu0 0
          %782 = vmatpush1.bf16.msra.mxu0 0
          %783 = vmatprep.subr.bf16.mxu0 0
          %784 = vmatpush1.bf16.msra.mxu0 0
          %785 = vmatprep.subr.bf16.mxu0 0
          %786 = vmatpush1.bf16.msra.mxu0 0
          %787 = vmatprep.subr.bf16.mxu0 0
          %788 = vmatpush1.bf16.msra.mxu0 0
          %789 = vmatprep.subr.bf16.mxu0 0
          %790 = vmatpush1.bf16.msra.mxu0 0
          %791 = vmatprep.subr.bf16.mxu0 0
          %792 = vmatpush1.bf16.msra.mxu0 0
          %793 = vmatprep.subr.bf16.mxu0 0
          %794 = vmatpush1.bf16.msra.mxu0 0
          %795 = vmatprep.subr.bf16.mxu0 0
          %796 = vmatpush1.bf16.msra.mxu0 0
          %797 = vmatprep.subr.bf16.mxu0 0
          %798 = vmatpush1.bf16.msra.mxu0 0
          %799 = vmatprep.subr.bf16.mxu0 0
          %800 = vmatpush1.bf16.msra.mxu0 0
          %801 = vmatprep.subr.bf16.mxu0 0
          %802 = vmatpush1.bf16.msra.mxu0 0
          %803 = vmatprep.subr.bf16.mxu0 0
          %804 = vmatpush1.bf16.msra.mxu0 0
          %805 = vmatprep.subr.bf16.mxu0 0
          %806 = vmatpush1.bf16.msra.mxu0 0
          %807 = vmatprep.subr.bf16.mxu0 0
          %808 = vmatpush1.bf16.msra.mxu0 0
          %809 = vmatprep.subr.bf16.mxu0 0
          %810 = vmatpush1.bf16.msra.mxu0 0
          %811 = vmatprep.mubr.bf16.mxu0 0
          %812 = vmatmul.mubr.bf16.gmra.mrb[0].mxu0 %v777
          %v813 = vpop.f32.mrb[0].mxu0
          %v814 = vadd.f32 0.0, %v813
          %v815 = vpop.f32.mrb[0].mxu0
          %v816 = vpop.f32.mrb[0].mxu0
          %v817 = vadd.f32 0.0, %v816
          %v818 = vpop.f32.mrb[0].mxu0
          %819 = vdwg.mxu0
          %v820 = vpack.c.bf16 %v817, %v814
          %v821 = vld [vmem:[#allocation6] sm:$0xf]
          %v822 = vld [vmem:[#allocation6 + $0x4] sm:$0xf]
          %v823 = vld [vmem:[#allocation6 + $0x8] sm:$0xf]
          %v824 = vld [vmem:[#allocation6 + $0xc] sm:$0xf]
          %v825 = vld [vmem:[#allocation6 + $0x10] sm:$0xf]
          %v826 = vld [vmem:[#allocation6 + $0x14] sm:$0xf]
          %v827 = vld [vmem:[#allocation6 + $0x18] sm:$0xf]
          %v828 = vld [vmem:[#allocation6 + $0x1c] sm:$0xf]
          %v829 = vld [vmem:[#allocation6 + $0x20] sm:$0xf]
          %v830 = vld [vmem:[#allocation6 + $0x24] sm:$0xf]
          %v831 = vld [vmem:[#allocation6 + $0x28] sm:$0xf]
          %v832 = vld [vmem:[#allocation6 + $0x2c] sm:$0xf]
          %v833 = vld [vmem:[#allocation6 + $0x30] sm:$0xf]
          %v834 = vld [vmem:[#allocation6 + $0x34] sm:$0xf]
          %v835 = vld [vmem:[#allocation6 + $0x38] sm:$0xf]
          %v836 = vld [vmem:[#allocation6 + $0x3c] sm:$0xf]
          %v853 = vunpack.c.l.b16 %v821
          %v854 = vunpack.c.l.b16 %v822
          %v855 = vunpack.c.l.b16 %v823
          %v856 = vunpack.c.l.b16 %v824
          %v857 = vunpack.c.l.b16 %v825
          %v858 = vunpack.c.l.b16 %v826
          %v859 = vunpack.c.l.b16 %v827
          %v860 = vunpack.c.l.b16 %v828
          %v861 = vunpack.c.l.b16 %v829
          %v862 = vunpack.c.l.b16 %v830
          %v863 = vunpack.c.l.b16 %v831
          %v864 = vunpack.c.l.b16 %v832
          %v865 = vunpack.c.l.b16 %v833
          %v866 = vunpack.c.l.b16 %v834
          %v867 = vunpack.c.l.b16 %v835
          %v868 = vunpack.c.l.b16 %v836
          %v869 = vpack.c.b16 %v854, %v853
          %v870 = vpack.c.b16 %v856, %v855
          %v871 = vpack.c.b16 %v858, %v857
          %v872 = vpack.c.b16 %v860, %v859
          %v873 = vpack.c.b16 %v862, %v861
          %v874 = vpack.c.b16 %v864, %v863
          %v875 = vpack.c.b16 %v866, %v865
          %v876 = vpack.c.b16 %v868, %v867
          %885 = vmatprep.subr.bf16.mxu0 0
          %886 = vmatpush1.bf16.msra.mxu0 %v869
          %887 = vmatprep.subr.bf16.mxu0 0
          %888 = vmatpush1.bf16.msra.mxu0 %v870
          %889 = vmatprep.subr.bf16.mxu0 0
          %890 = vmatpush1.bf16.msra.mxu0 %v871
          %891 = vmatprep.subr.bf16.mxu0 0
          %892 = vmatpush1.bf16.msra.mxu0 %v872
          %893 = vmatprep.subr.bf16.mxu0 0
          %894 = vmatpush1.bf16.msra.mxu0 %v873
          %895 = vmatprep.subr.bf16.mxu0 0
          %896 = vmatpush1.bf16.msra.mxu0 %v874
          %897 = vmatprep.subr.bf16.mxu0 0
          %898 = vmatpush1.bf16.msra.mxu0 %v875
          %899 = vmatprep.subr.bf16.mxu0 0
          %900 = vmatpush1.bf16.msra.mxu0 %v876
          %901 = vmatprep.subr.bf16.mxu0 0
          %902 = vmatpush1.bf16.msra.mxu0 0
          %903 = vmatprep.subr.bf16.mxu0 0
          %904 = vmatpush1.bf16.msra.mxu0 0
          %905 = vmatprep.subr.bf16.mxu0 0
          %906 = vmatpush1.bf16.msra.mxu0 0
          %907 = vmatprep.subr.bf16.mxu0 0
          %908 = vmatpush1.bf16.msra.mxu0 0
          %909 = vmatprep.subr.bf16.mxu0 0
          %910 = vmatpush1.bf16.msra.mxu0 0
          %911 = vmatprep.subr.bf16.mxu0 0
          %912 = vmatpush1.bf16.msra.mxu0 0
          %913 = vmatprep.subr.bf16.mxu0 0
          %914 = vmatpush1.bf16.msra.mxu0 0
          %915 = vmatprep.subr.bf16.mxu0 0
          %916 = vmatpush1.bf16.msra.mxu0 0
          %917 = vmatprep.mubr.bf16.mxu0 0
          %918 = vmatmul.mubr.bf16.gmra.mrb[0].mxu0 %v820
          %v919 = vpop.f32.mrb[0].mxu0
          %v920 = vadd.f32 0.0, %v919
          %v921 = vpop.f32.mrb[0].mxu0
          %v922 = vpop.f32.mrb[0].mxu0
          %v923 = vadd.f32 0.0, %v922
          %v924 = vpop.f32.mrb[0].mxu0
          %925 = vdwg.mxu0
          %v926 = vadd.f32 %v431, %v920
          %v927 = vadd.f32 %v432, %v923
          %v928 = vld [vmem:[%s3] sm:$0x1]
          %v929 = vmul.f32 %v926, %v926
          %v930 = vmul.f32 %v927, %v927
          %931 = vadd.xlane.f32.xlu0 %v929
          %v932 = vpop.xlane.xlu0 %931
          %933 = vadd.xlane.f32.xlu0 %v930
          %v934 = vpop.xlane.xlu0 %933
          %v935 = vmul.f32 %v932, %v440
          %v936 = vmul.f32 %v934, %v440
          %v937 = vadd.f32 %v935, 1e-06
          %v938 = vadd.f32 %v936, 1e-06
          %v939 = vrsqrt.pop %v937
          %v940 = vrsqrt.pop %v938
          %v941 = vmul.f32 %v926, %v939
          %v942 = vmul.f32 %v927, %v940
          %v944 = vlaneseq
          %v945 = vshrl.u32 %v944, 7
          %v946 = vsub.s32 0, %v945
          %v947 = vrot.slane %v928, %v946
          %v949 = vmul.f32 %v941, %v947
          %v950 = vmul.f32 %v942, %v947
          %v951 = vpack.c.bf16 %v950, %v949
          %v952 = vld [vmem:[%s7] sm:$0xff]
          %v953 = vld [vmem:[%s7 + $0x8] sm:$0xff]
          %v954 = vld [vmem:[%s7 + $0x10] sm:$0xff]
          %v955 = vld [vmem:[%s7 + $0x18] sm:$0xff]
          %v956 = vld [vmem:[%s7 + $0x20] sm:$0xff]
          %v957 = vld [vmem:[%s7 + $0x28] sm:$0xff]
          %v958 = vld [vmem:[%s7 + $0x30] sm:$0xff]
          %v959 = vld [vmem:[%s7 + $0x38] sm:$0xff]
          %v960 = vld [vmem:[%s7 + $0x40] sm:$0xff]
          %v961 = vld [vmem:[%s7 + $0x48] sm:$0xff]
          %v962 = vld [vmem:[%s7 + $0x50] sm:$0xff]
          %v963 = vld [vmem:[%s7 + $0x58] sm:$0xff]
          %v964 = vld [vmem:[%s7 + $0x60] sm:$0xff]
          %v965 = vld [vmem:[%s7 + $0x68] sm:$0xff]
          %v966 = vld [vmem:[%s7 + $0x70] sm:$0xff]
          %v967 = vld [vmem:[%s7 + $0x78] sm:$0xff]
          %v984 = vunpack.c.l.b16 %v952
          %v985 = vunpack.c.h.b16 %v952
          %v986 = vunpack.c.l.b16 %v953
          %v987 = vunpack.c.h.b16 %v953
          %v988 = vunpack.c.l.b16 %v954
          %v989 = vunpack.c.h.b16 %v954
          %v990 = vunpack.c.l.b16 %v955
          %v991 = vunpack.c.h.b16 %v955
          %v992 = vunpack.c.l.b16 %v956
          %v993 = vunpack.c.h.b16 %v956
          %v994 = vunpack.c.l.b16 %v957
          %v995 = vunpack.c.h.b16 %v957
          %v996 = vunpack.c.l.b16 %v958
          %v997 = vunpack.c.h.b16 %v958
          %v998 = vunpack.c.l.b16 %v959
          %v999 = vunpack.c.h.b16 %v959
          %v1000 = vunpack.c.l.b16 %v960
          %v1001 = vunpack.c.h.b16 %v960
          %v1002 = vunpack.c.l.b16 %v961
          %v1003 = vunpack.c.h.b16 %v961
          %v1004 = vunpack.c.l.b16 %v962
          %v1005 = vunpack.c.h.b16 %v962
          %v1006 = vunpack.c.l.b16 %v963
          %v1007 = vunpack.c.h.b16 %v963
          %v1008 = vunpack.c.l.b16 %v964
          %v1009 = vunpack.c.h.b16 %v964
          %v1010 = vunpack.c.l.b16 %v965
          %v1011 = vunpack.c.h.b16 %v965
          %v1012 = vunpack.c.l.b16 %v966
          %v1013 = vunpack.c.h.b16 %v966
          %v1014 = vunpack.c.l.b16 %v967
          %v1015 = vunpack.c.h.b16 %v967
          %v1016 = vpack.c.b16 %v986, %v984
          %v1017 = vpack.c.b16 %v987, %v985
          %v1018 = vpack.c.b16 %v990, %v988
          %v1019 = vpack.c.b16 %v991, %v989
          %v1020 = vpack.c.b16 %v994, %v992
          %v1021 = vpack.c.b16 %v995, %v993
          %v1022 = vpack.c.b16 %v998, %v996
          %v1023 = vpack.c.b16 %v999, %v997
          %v1024 = vpack.c.b16 %v1002, %v1000
          %v1025 = vpack.c.b16 %v1003, %v1001
          %v1026 = vpack.c.b16 %v1006, %v1004
          %v1027 = vpack.c.b16 %v1007, %v1005
          %v1028 = vpack.c.b16 %v1010, %v1008
          %v1029 = vpack.c.b16 %v1011, %v1009
          %v1030 = vpack.c.b16 %v1014, %v1012
          %v1031 = vpack.c.b16 %v1015, %v1013
          %1048 = vmatprep.subr.bf16.mxu0 %v1017
          %1049 = vmatpush1.bf16.msra.mxu0 %v1016
          %1050 = vmatprep.subr.bf16.mxu0 %v1019
          %1051 = vmatpush1.bf16.msra.mxu0 %v1018
          %1052 = vmatprep.subr.bf16.mxu0 %v1021
          %1053 = vmatpush1.bf16.msra.mxu0 %v1020
          %1054 = vmatprep.subr.bf16.mxu0 %v1023
          %1055 = vmatpush1.bf16.msra.mxu0 %v1022
          %1056 = vmatprep.subr.bf16.mxu0 %v1025
          %1057 = vmatpush1.bf16.msra.mxu0 %v1024
          %1058 = vmatprep.subr.bf16.mxu0 %v1027
          %1059 = vmatpush1.bf16.msra.mxu0 %v1026
          %1060 = vmatprep.subr.bf16.mxu0 %v1029
          %1061 = vmatpush1.bf16.msra.mxu0 %v1028
          %1062 = vmatprep.subr.bf16.mxu0 %v1031
          %1063 = vmatpush1.bf16.msra.mxu0 %v1030
          %1064 = vmatprep.subr.bf16.mxu0 0
          %1065 = vmatpush1.bf16.msra.mxu0 0
          %1066 = vmatprep.subr.bf16.mxu0 0
          %1067 = vmatpush1.bf16.msra.mxu0 0
          %1068 = vmatprep.subr.bf16.mxu0 0
          %1069 = vmatpush1.bf16.msra.mxu0 0
          %1070 = vmatprep.subr.bf16.mxu0 0
          %1071 = vmatpush1.bf16.msra.mxu0 0
          %1072 = vmatprep.subr.bf16.mxu0 0
          %1073 = vmatpush1.bf16.msra.mxu0 0
          %1074 = vmatprep.subr.bf16.mxu0 0
          %1075 = vmatpush1.bf16.msra.mxu0 0
          %1076 = vmatprep.subr.bf16.mxu0 0
          %1077 = vmatpush1.bf16.msra.mxu0 0
          %1078 = vmatprep.subr.bf16.mxu0 0
          %1079 = vmatpush1.bf16.msra.mxu0 0
          %1080 = vmatprep.mubr.bf16.mxu0 0
          %1081 = vmatmul.mubr.bf16.gmra.mrb[0].mxu0 %v951
          %v1082 = vpop.f32.mrb[0].mxu0
          %v1083 = vadd.f32 0.0, %v1082
          %v1084 = vpop.f32.mrb[0].mxu0
          %v1085 = vadd.f32 0.0, %v1084
          %v1086 = vpop.f32.mrb[0].mxu0
          %v1087 = vadd.f32 0.0, %v1086
          %v1088 = vpop.f32.mrb[0].mxu0
          %v1089 = vadd.f32 0.0, %v1088
          %1090 = vdwg.mxu0
          %v1091 = vmul.f32 %v1083, %v1083
          %v1092 = vmul.f32 %v1085, %v1085
          %v1093 = vmul.f32 %v1087, %v1087
          %v1094 = vmul.f32 %v1089, %v1089
          %v1095 = vmul.f32 %v1083, %v1091
          %v1096 = vmul.f32 %v1085, %v1092
          %v1097 = vmul.f32 %v1087, %v1093
          %v1098 = vmul.f32 %v1089, %v1094
          %v1099 = vmul.f32 %v1095, 0.044715
          %v1100 = vmul.f32 %v1096, 0.044715
          %v1101 = vmul.f32 %v1097, 0.044715
          %v1102 = vmul.f32 %v1098, 0.044715
          %v1103 = vadd.f32 %v1083, %v1099
          %v1104 = vadd.f32 %v1085, %v1100
          %v1105 = vadd.f32 %v1087, %v1101
          %v1106 = vadd.f32 %v1089, %v1102
          %v1107 = vmul.f32 %v1103, 0.7978846
          %v1108 = vmul.f32 %v1104, 0.7978846
          %v1109 = vmul.f32 %v1105, 0.7978846
          %v1110 = vmul.f32 %v1106, 0.7978846
          %v1111 = vtanh.pop %v1107
          %v1112 = vtanh.pop %v1108
          %v1113 = vtanh.pop %v1109
          %v1114 = vtanh.pop %v1110
          %v1115 = vadd.f32 %v1111, 1.0
          %v1116 = vadd.f32 %v1112, 1.0
          %v1117 = vadd.f32 %v1113, 1.0
          %v1118 = vadd.f32 %v1114, 1.0
          %v1119 = vmul.f32 %v1115, 0.5
          %v1120 = vmul.f32 %v1116, 0.5
          %v1121 = vmul.f32 %v1117, 0.5
          %v1122 = vmul.f32 %v1118, 0.5
          %v1123 = vmul.f32 %v1083, %v1119
          %v1124 = vmul.f32 %v1085, %v1120
          %v1125 = vmul.f32 %v1087, %v1121
          %v1126 = vmul.f32 %v1089, %v1122
          %v1127 = vpack.c.bf16 %v1125, %v1123
          %v1128 = vpack.c.bf16 %v1126, %v1124
          %v1129 = vld [vmem:[#allocation8] sm:$0xf]
          %v1130 = vld [vmem:[#allocation8 + $0x4] sm:$0xf]
          %v1131 = vld [vmem:[#allocation8 + $0x8] sm:$0xf]
          %v1132 = vld [vmem:[#allocation8 + $0xc] sm:$0xf]
          %v1133 = vld [vmem:[#allocation8 + $0x10] sm:$0xf]
          %v1134 = vld [vmem:[#allocation8 + $0x14] sm:$0xf]
          %v1135 = vld [vmem:[#allocation8 + $0x18] sm:$0xf]
          %v1136 = vld [vmem:[#allocation8 + $0x1c] sm:$0xf]
          %v1137 = vld [vmem:[#allocation8 + $0x20] sm:$0xf]
          %v1138 = vld [vmem:[#allocation8 + $0x24] sm:$0xf]
          %v1139 = vld [vmem:[#allocation8 + $0x28] sm:$0xf]
          %v1140 = vld [vmem:[#allocation8 + $0x2c] sm:$0xf]
          %v1141 = vld [vmem:[#allocation8 + $0x30] sm:$0xf]
          %v1142 = vld [vmem:[#allocation8 + $0x34] sm:$0xf]
          %v1143 = vld [vmem:[#allocation8 + $0x38] sm:$0xf]
          %v1144 = vld [vmem:[#allocation8 + $0x3c] sm:$0xf]
          %v1145 = vld [vmem:[#allocation8 + $0x40] sm:$0xf]
          %v1146 = vld [vmem:[#allocation8 + $0x44] sm:$0xf]
          %v1147 = vld [vmem:[#allocation8 + $0x48] sm:$0xf]
          %v1148 = vld [vmem:[#allocation8 + $0x4c] sm:$0xf]
          %v1149 = vld [vmem:[#allocation8 + $0x50] sm:$0xf]
          %v1150 = vld [vmem:[#allocation8 + $0x54] sm:$0xf]
          %v1151 = vld [vmem:[#allocation8 + $0x58] sm:$0xf]
          %v1152 = vld [vmem:[#allocation8 + $0x5c] sm:$0xf]
          %v1153 = vld [vmem:[#allocation8 + $0x60] sm:$0xf]
          %v1154 = vld [vmem:[#allocation8 + $0x64] sm:$0xf]
          %v1155 = vld [vmem:[#allocation8 + $0x68] sm:$0xf]
          %v1156 = vld [vmem:[#allocation8 + $0x6c] sm:$0xf]
          %v1157 = vld [vmem:[#allocation8 + $0x70] sm:$0xf]
          %v1158 = vld [vmem:[#allocation8 + $0x74] sm:$0xf]
          %v1159 = vld [vmem:[#allocation8 + $0x78] sm:$0xf]
          %v1160 = vld [vmem:[#allocation8 + $0x7c] sm:$0xf]
          %v1193 = vunpack.c.l.b16 %v1129
          %v1194 = vunpack.c.l.b16 %v1130
          %v1195 = vunpack.c.l.b16 %v1131
          %v1196 = vunpack.c.l.b16 %v1132
          %v1197 = vunpack.c.l.b16 %v1133
          %v1198 = vunpack.c.l.b16 %v1134
          %v1199 = vunpack.c.l.b16 %v1135
          %v1200 = vunpack.c.l.b16 %v1136
          %v1201 = vunpack.c.l.b16 %v1137
          %v1202 = vunpack.c.l.b16 %v1138
          %v1203 = vunpack.c.l.b16 %v1139
          %v1204 = vunpack.c.l.b16 %v1140
          %v1205 = vunpack.c.l.b16 %v1141
          %v1206 = vunpack.c.l.b16 %v1142
          %v1207 = vunpack.c.l.b16 %v1143
          %v1208 = vunpack.c.l.b16 %v1144
          %v1209 = vunpack.c.l.b16 %v1145
          %v1210 = vunpack.c.l.b16 %v1146
          %v1211 = vunpack.c.l.b16 %v1147
          %v1212 = vunpack.c.l.b16 %v1148
          %v1213 = vunpack.c.l.b16 %v1149
          %v1214 = vunpack.c.l.b16 %v1150
          %v1215 = vunpack.c.l.b16 %v1151
          %v1216 = vunpack.c.l.b16 %v1152
          %v1217 = vunpack.c.l.b16 %v1153
          %v1218 = vunpack.c.l.b16 %v1154
          %v1219 = vunpack.c.l.b16 %v1155
          %v1220 = vunpack.c.l.b16 %v1156
          %v1221 = vunpack.c.l.b16 %v1157
          %v1222 = vunpack.c.l.b16 %v1158
          %v1223 = vunpack.c.l.b16 %v1159
          %v1224 = vunpack.c.l.b16 %v1160
          %v1225 = vpack.c.b16 %v1194, %v1193
          %v1226 = vpack.c.b16 %v1196, %v1195
          %v1227 = vpack.c.b16 %v1198, %v1197
          %v1228 = vpack.c.b16 %v1200, %v1199
          %v1229 = vpack.c.b16 %v1202, %v1201
          %v1230 = vpack.c.b16 %v1204, %v1203
          %v1231 = vpack.c.b16 %v1206, %v1205
          %v1232 = vpack.c.b16 %v1208, %v1207
          %v1233 = vpack.c.b16 %v1210, %v1209
          %v1234 = vpack.c.b16 %v1212, %v1211
          %v1235 = vpack.c.b16 %v1214, %v1213
          %v1236 = vpack.c.b16 %v1216, %v1215
          %v1237 = vpack.c.b16 %v1218, %v1217
          %v1238 = vpack.c.b16 %v1220, %v1219
          %v1239 = vpack.c.b16 %v1222, %v1221
          %v1240 = vpack.c.b16 %v1224, %v1223
          %1257 = vmatprep.subr.bf16.mxu0 0
          %1258 = vmatpush1.bf16.msra.mxu0 %v1225
          %1259 = vmatprep.subr.bf16.mxu0 0
          %1260 = vmatpush1.bf16.msra.mxu0 %v1226
          %1261 = vmatprep.subr.bf16.mxu0 0
          %1262 = vmatpush1.bf16.msra.mxu0 %v1227
          %1263 = vmatprep.subr.bf16.mxu0 0
          %1264 = vmatpush1.bf16.msra.mxu0 %v1228
          %1265 = vmatprep.subr.bf16.mxu0 0
          %1266 = vmatpush1.bf16.msra.mxu0 %v1229
          %1267 = vmatprep.subr.bf16.mxu0 0
          %1268 = vmatpush1.bf16.msra.mxu0 %v1230
          %1269 = vmatprep.subr.bf16.mxu0 0
          %1270 = vmatpush1.bf16.msra.mxu0 %v1231
          %1271 = vmatprep.subr.bf16.mxu0 0
          %1272 = vmatpush1.bf16.msra.mxu0 %v1232
          %1273 = vmatprep.subr.bf16.mxu0 0
          %1274 = vmatpush1.bf16.msra.mxu0 %v1233
          %1275 = vmatprep.subr.bf16.mxu0 0
          %1276 = vmatpush1.bf16.msra.mxu0 %v1234
          %1277 = vmatprep.subr.bf16.mxu0 0
          %1278 = vmatpush1.bf16.msra.mxu0 %v1235
          %1279 = vmatprep.subr.bf16.mxu0 0
          %1280 = vmatpush1.bf16.msra.mxu0 %v1236
          %1281 = vmatprep.subr.bf16.mxu0 0
          %1282 = vmatpush1.bf16.msra.mxu0 %v1237
          %1283 = vmatprep.subr.bf16.mxu0 0
          %1284 = vmatpush1.bf16.msra.mxu0 %v1238
          %1285 = vmatprep.subr.bf16.mxu0 0
          %1286 = vmatpush1.bf16.msra.mxu0 %v1239
          %1287 = vmatprep.subr.bf16.mxu0 0
          %1288 = vmatpush1.bf16.msra.mxu0 %v1240
          %1289 = vmatprep.mubr.bf16.mxu0 %v1128
          %1290 = vmatmul.mubr.bf16.gmra.mrb[0].mxu0 %v1127
          %v1291 = vpop.f32.mrb[0].mxu0
          %v1292 = vadd.f32 0.0, %v1291
          %v1293 = vpop.f32.mrb[0].mxu0
          %v1294 = vpop.f32.mrb[0].mxu0
          %v1295 = vadd.f32 0.0, %v1294
          %v1296 = vpop.f32.mrb[0].mxu0
          %1297 = vdwg.mxu0
          %v1298 = vadd.f32 %v926, %v1292
          %v1299 = vadd.f32 %v927, %v1295
          %v1300 = vld [vmem:[%s4] sm:$0x1]
          %v1301 = vmul.f32 %v1298, %v1298
          %v1302 = vmul.f32 %v1299, %v1299
          %1303 = vadd.xlane.f32.xlu0 %v1301
          %v1304 = vpop.xlane.xlu0 %1303
          %1305 = vadd.xlane.f32.xlu0 %v1302
          %v1306 = vpop.xlane.xlu0 %1305
          %v1307 = vmul.f32 %v1304, %v440
          %v1308 = vmul.f32 %v1306, %v440
          %v1309 = vadd.f32 %v1307, 1e-06
          %v1310 = vadd.f32 %v1308, 1e-06
          %v1311 = vrsqrt.pop %v1309
          %v1312 = vrsqrt.pop %v1310
          %v1313 = vmul.f32 %v1298, %v1311
          %v1314 = vmul.f32 %v1299, %v1312
          %v1316 = vlaneseq
          %v1317 = vshrl.u32 %v1316, 7
          %v1318 = vsub.s32 0, %v1317
          %v1319 = vrot.slane %v1300, %v1318
          %v1321 = vmul.f32 %v1313, %v1319
          %v1322 = vmul.f32 %v1314, %v1319
          %v1323 = vpack.c.bf16 %v1322, %v1321
          %1324 = vst [vmem:[#allocation2] sm:$0xff] %v1323
        $region80: #{lm_forward.1} parent=59 // pred_fallthru
          _
        %v1325 = vld [vmem:[#allocation2] sm:$0xff]
        %v1326 = vld [vmem:[%s385] sm:$0xff]
        %v1327 = vld [vmem:[%s385 + $0x8] sm:$0xff]
        %v1328 = vld [vmem:[%s385 + $0x10] sm:$0xff]
        %v1329 = vld [vmem:[%s385 + $0x18] sm:$0xff]
        %v1330 = vld [vmem:[%s385 + $0x20] sm:$0xff]
        %v1331 = vld [vmem:[%s385 + $0x28] sm:$0xff]
        %v1332 = vld [vmem:[%s385 + $0x30] sm:$0xff]
        %v1333 = vld [vmem:[%s385 + $0x38] sm:$0xff]
        %v1334 = vld [vmem:[%s385 + $0x40] sm:$0xff]
        %v1335 = vld [vmem:[%s385 + $0x48] sm:$0xff]
        %v1336 = vld [vmem:[%s385 + $0x50] sm:$0xff]
        %v1337 = vld [vmem:[%s385 + $0x58] sm:$0xff]
        %v1338 = vld [vmem:[%s385 + $0x60] sm:$0xff]
        %v1339 = vld [vmem:[%s385 + $0x68] sm:$0xff]
        %v1340 = vld [vmem:[%s385 + $0x70] sm:$0xff]
        %v1341 = vld [vmem:[%s385 + $0x78] sm:$0xff]
        %v1358 = vunpack.c.l.b16 %v1326
        %v1359 = vunpack.c.h.b16 %v1326
        %v1360 = vunpack.c.l.b16 %v1327
        %v1361 = vunpack.c.h.b16 %v1327
        %v1362 = vunpack.c.l.b16 %v1328
        %v1363 = vunpack.c.h.b16 %v1328
        %v1364 = vunpack.c.l.b16 %v1329
        %v1365 = vunpack.c.h.b16 %v1329
        %v1366 = vunpack.c.l.b16 %v1330
        %v1367 = vunpack.c.h.b16 %v1330
        %v1368 = vunpack.c.l.b16 %v1331
        %v1369 = vunpack.c.h.b16 %v1331
        %v1370 = vunpack.c.l.b16 %v1332
        %v1371 = vunpack.c.h.b16 %v1332
        %v1372 = vunpack.c.l.b16 %v1333
        %v1373 = vunpack.c.h.b16 %v1333
        %v1374 = vunpack.c.l.b16 %v1334
        %v1375 = vunpack.c.h.b16 %v1334
        %v1376 = vunpack.c.l.b16 %v1335
        %v1377 = vunpack.c.h.b16 %v1335
        %v1378 = vunpack.c.l.b16 %v1336
        %v1379 = vunpack.c.h.b16 %v1336
        %v1380 = vunpack.c.l.b16 %v1337
        %v1381 = vunpack.c.h.b16 %v1337
        %v1382 = vunpack.c.l.b16 %v1338
        %v1383 = vunpack.c.h.b16 %v1338
        %v1384 = vunpack.c.l.b16 %v1339
        %v1385 = vunpack.c.h.b16 %v1339
        %v1386 = vunpack.c.l.b16 %v1340
        %v1387 = vunpack.c.h.b16 %v1340
        %v1388 = vunpack.c.l.b16 %v1341
        %v1389 = vunpack.c.h.b16 %v1341
        %v1390 = vpack.c.b16 %v1360, %v1358
        %v1391 = vpack.c.b16 %v1361, %v1359
        %v1392 = vpack.c.b16 %v1364, %v1362
        %v1393 = vpack.c.b16 %v1365, %v1363
        %v1394 = vpack.c.b16 %v1368, %v1366
        %v1395 = vpack.c.b16 %v1369, %v1367
        %v1396 = vpack.c.b16 %v1372, %v1370
        %v1397 = vpack.c.b16 %v1373, %v1371
        %v1398 = vpack.c.b16 %v1376, %v1374
        %v1399 = vpack.c.b16 %v1377, %v1375
        %v1400 = vpack.c.b16 %v1380, %v1378
        %v1401 = vpack.c.b16 %v1381, %v1379
        %v1402 = vpack.c.b16 %v1384, %v1382
        %v1403 = vpack.c.b16 %v1385, %v1383
        %v1404 = vpack.c.b16 %v1388, %v1386
        %v1405 = vpack.c.b16 %v1389, %v1387
        %1422 = vmatprep.subr.bf16.mxu0 %v1391
        %1423 = vmatpush1.bf16.msra.mxu0 %v1390
        %1424 = vmatprep.subr.bf16.mxu0 %v1393
        %1425 = vmatpush1.bf16.msra.mxu0 %v1392
        %1426 = vmatprep.subr.bf16.mxu0 %v1395
        %1427 = vmatpush1.bf16.msra.mxu0 %v1394
        %1428 = vmatprep.subr.bf16.mxu0 %v1397
        %1429 = vmatpush1.bf16.msra.mxu0 %v1396
        %1430 = vmatprep.subr.bf16.mxu0 %v1399
        %1431 = vmatpush1.bf16.msra.mxu0 %v1398
        %1432 = vmatprep.subr.bf16.mxu0 %v1401
        %1433 = vmatpush1.bf16.msra.mxu0 %v1400
        %1434 = vmatprep.subr.bf16.mxu0 %v1403
        %1435 = vmatpush1.bf16.msra.mxu0 %v1402
        %1436 = vmatprep.subr.bf16.mxu0 %v1405
        %1437 = vmatpush1.bf16.msra.mxu0 %v1404
        %1438 = vmatprep.subr.bf16.mxu0 0
        %1439 = vmatpush1.bf16.msra.mxu0 0
        %1440 = vmatprep.subr.bf16.mxu0 0
        %1441 = vmatpush1.bf16.msra.mxu0 0
        %1442 = vmatprep.subr.bf16.mxu0 0
        %1443 = vmatpush1.bf16.msra.mxu0 0
        %1444 = vmatprep.subr.bf16.mxu0 0
        %1445 = vmatpush1.bf16.msra.mxu0 0
        %1446 = vmatprep.subr.bf16.mxu0 0
        %1447 = vmatpush1.bf16.msra.mxu0 0
        %1448 = vmatprep.subr.bf16.mxu0 0
        %1449 = vmatpush1.bf16.msra.mxu0 0
        %1450 = vmatprep.subr.bf16.mxu0 0
        %1451 = vmatpush1.bf16.msra.mxu0 0
        %1452 = vmatprep.subr.bf16.mxu0 0
        %1453 = vmatpush1.bf16.msra.mxu0 0
        %1454 = vmatprep.mubr.bf16.mxu0 0
        %1455 = vmatmul.mubr.bf16.gmra.mrb[0].mxu0 %v1325
        %v1456 = vpop.f32.mrb[0].mxu0
        %v1457 = vadd.f32 0.0, %v1456
        %v1458 = vpop.f32.mrb[0].mxu0
        %v1459 = vadd.f32 0.0, %v1458
        %v1460 = vpop.f32.mrb[0].mxu0
        %v1461 = vadd.f32 0.0, %v1460
        %v1462 = vpop.f32.mrb[0].mxu0
        %v1463 = vadd.f32 0.0, %v1462
        %1464 = vdwg.mxu0
        %1465 = vst [vmem:[%s421] sm:$0xff] %v1457
        %1466 = vst [vmem:[%s421 + $0x8] sm:$0xff] %v1459
        %1467 = vst [vmem:[%s421 + $0x10] sm:$0xff] %v1461
        %1468 = vst [vmem:[%s421 + $0x18] sm:$0xff] %v1463
        %s1469 = sand.u32 %s252, 1
        %s1470 = scalar_lea.sflag [#allocation5], %s1469
        %s1471 = sand.u32 %s252, 1
        %s1472 = smul.addr %s1471, 32
        %s1473 = scalar_lea.vmem [#allocation11], %s1472
        // Predicated region
        $region81: #{lm_forward.1} parent=59 // pred_check
          %p1474 = pneg %p262
        $region82: #{lm_forward.1} parent=59 // pred_check_branch
          %1476 = sbr.rel (%p1474) target = $region84
        $region83: #{lm_forward.1} parent=59 // pred_region
          %s1477 = smul.u32 2, %s29
          %s1479 = ssub.s32 512, 512
          %1480 = vsyncadd %s1470, %s1479
          %s1481 = smul.addr %s1477, 128
          %s1482 = scalar_lea.hbm %s10, %s1481
          %s1483 = sshll.u32 %s1473, 4
          %s1484 = int_to_ptr.vmem [resolvable:$true] %s1483
          %1489 = dma.vmem_to_hbm [thread:$0]  %s1484, 512, %s1482, %s1470, 256, 512, 16
        $region84: #{lm_forward.1} parent=59 // pred_fallthru
          _
      $region60: #{lm_forward.1} parent=5 // pred_fallthru
        _
      %p1490 = scmp.le.s32.totalorder 2, %s24
      // Predicated region
      $region85: #{lm_forward.1} parent=5 // pred_check
        %p1491 = pneg %p1490
      $region86: #{lm_forward.1} parent=5 // pred_check_branch
        %1493 = sbr.rel (%p1491) target = $region88
      $region87: #{lm_forward.1} parent=5 // pred_region
        %s1494 = ssub.s32 %s24, 2
        // Predicated region
        $region89: #{lm_forward.1} parent=87 // pred_check
          %p1495 = pneg %p268
        $region90: #{lm_forward.1} parent=87 // pred_check_branch
          %1497 = sbr.rel (%p1495) target = $region92
        $region91: #{lm_forward.1} parent=87 // pred_region
          %s1498 = sand.u32 %s253, 1
          %s1499 = scalar_lea.sflag [#allocation5], %s1498
          %s1500 = sand.u32 %s253, 1
          %s1501 = smul.addr %s1500, 32
          %s1502 = scalar_lea.vmem [#allocation11], %s1501
          %1503 = dma.done %s1499, 512
        $region92: #{lm_forward.1} parent=87 // pred_fallthru
          _
      $region88: #{lm_forward.1} parent=5 // pred_fallthru
        _
    $region6: #{lm_forward.1} parent=1 // loop_footer
      %s28 = sadd.s32 1, %s24
    $region7: #{lm_forward.1} parent=1 // loop_footer_branch
      %23 = sbr.rel target = $region3
    $region8: #{lm_forward.1} parent=1 // loop_exit
      _
    %1504 = vsyncpa [#allocation4], 1
    %s1505 = scalar_lea.sflag [#allocation4], 1
    %1506 = vsyncpa %s1505, 1
    %1507 = vsyncpa [#allocation7], 1
    %1508 = vsyncpa [#allocation10], 1
    %s1509 = scalar_lea.sflag [#allocation10], 1
    %1510 = vsyncpa %s1509, 1
    %1511 = vsyncpa [#allocation5], 1
    %s1512 = scalar_lea.sflag [#allocation5], 1
    %1513 = vsyncpa %s1512, 1

</llo_original>
